<compile_context>
chip_gen: v7x
topology: tpu7x:2x2x1
jax: 0.10.0
libtpu: 0.0.40
codegen_flags: <defaults>
</compile_context>

<pallas_src>
import functools
import math

import jax
import jax.numpy as jnp
import numpy as np
from jax.experimental import pallas as pl
from jax.experimental.pallas import tpu as pltpu

# ------------------------- model config (small, deterministic) -----------------
SEQ = 8
BATCH = 2
HIDDEN = 32
HEADS = 4
FFN = 64
HEAD_DIM = HIDDEN // HEADS
LN_EPS = 1e-5


# ------------------------------- in-kernel helpers -----------------------------
def _erf_poly(x):
    # Abramowitz & Stegun 7.1.26 rational approximation (|err| <= 1.5e-7),
    # built from exp/add/mul + EUP reciprocal so it lowers cleanly in Mosaic.
    a1, a2, a3, a4, a5 = 0.254829592, -0.284496736, 1.421413741, -1.453152027, 1.061405429
    p = 0.3275911
    sign = jnp.where(x >= 0.0, 1.0, -1.0)
    ax = jnp.abs(x)
    t = pl.reciprocal(1.0 + p * ax, approx=True)        # EUP slot, off the VALU path
    poly = ((((a5 * t + a4) * t + a3) * t + a2) * t + a1) * t
    return sign * (1.0 - poly * jnp.exp(-ax * ax))


def _gelu_exact(x):
    # nn.GELU(approximate='none'): 0.5 * x * (1 + erf(x / sqrt(2)))
    return 0.5 * x * (1.0 + _erf_poly(x * (1.0 / math.sqrt(2.0))))


def _layernorm(v, w, b):
    mu = jnp.mean(v, axis=-1, keepdims=True)
    d = v - mu
    var = jnp.mean(d * d, axis=-1, keepdims=True)
    return d * jax.lax.rsqrt(var + LN_EPS) * w + b


# ----------------------------------- kernel ------------------------------------
def _encoder_layer_kernel(
    x_ref,                                   # (N, E)   f32, N = S*B, native (s, b) row order
    bias_ref,                                # (N, N)   f32, block-diagonal batch mask (0 / -1e30)
    ln1w_ref, ln1b_ref,                      # (1, E)   f32
    wqkv_ref, bqkv_ref,                      # (E, 3E) bf16, (1, 3E) f32  (q-scale folded in)
    wo_ref, bo_ref,                          # (E, E)  bf16, (1, E)  f32
    ln2w_ref, ln2b_ref,                      # (1, E)   f32
    w1_ref, b1_ref,                          # (E, F)  bf16, (1, F)  f32
    w2_ref, b2_ref,                          # (F, E)  bf16, (1, E)  f32
    out_ref,                                 # (N, E)   f32
    o_scratch,                               # (N, E)   f32 VMEM scratch (concat-head PV buffer)
    *, heads, head_dim,
):
    f32, bf16 = jnp.float32, jnp.bfloat16
    e = heads * head_dim

    x = x_ref[...]                                       # (N, E) f32

    # ---- norm1 + fused QKV projection: one (N,E)x(E,3E) MXU op ----
    zn = _layernorm(x, ln1w_ref[0], ln1b_ref[0])
    qkv = jnp.dot(zn.astype(bf16), wqkv_ref[...],
                  preferred_element_type=f32) + bqkv_ref[0]          # (N, 3E)

    # ---- attention over all rows, block-diagonal batch bias, per-head lane windows ----
    bias = bias_ref[...]                                             # (N, N)
    dn = (((1,), (1,)), ((), ()))                                    # q @ k^T (contract last dims)
    for h in range(heads):
        lo = h * head_dim
        q_h = qkv[:, lo:lo + head_dim].astype(bf16)                  # (N, Dh)
        k_h = qkv[:, e + lo:e + lo + head_dim].astype(bf16)
        v_h = qkv[:, 2 * e + lo:2 * e + lo + head_dim].astype(bf16)

        s = jax.lax.dot_general(q_h, k_h, dn, preferred_element_type=f32) + bias
        s = s - jnp.max(s, axis=-1, keepdims=True)
        p = jnp.exp(s)
        p = p * pl.reciprocal(jnp.sum(p, axis=-1, keepdims=True), approx=True)

        # head-major lane-window write into the (N, E) concat buffer
        o_scratch[:, lo:lo + head_dim] = jnp.dot(p.astype(bf16), v_h,
                                                 preferred_element_type=f32)

    # ---- fused output projection: one (N,E)x(E,E) MXU op ----
    attn = jnp.dot(o_scratch[...].astype(bf16), wo_ref[...],
                   preferred_element_type=f32) + bo_ref[0]           # (N, E)

    # residual 1 (dropout == identity in eval mode)
    z1 = x + attn

    # ---- norm2 + feed-forward ----
    zn2 = _layernorm(z1, ln2w_ref[0], ln2b_ref[0])
    h1 = jnp.dot(zn2.astype(bf16), w1_ref[...],
                 preferred_element_type=f32) + b1_ref[0]
    h1 = _gelu_exact(h1)
    ff = jnp.dot(h1.astype(bf16), w2_ref[...],
                 preferred_element_type=f32) + b2_ref[0]

    out_ref[...] = (z1 + ff).astype(out_ref.dtype)


# ------------------------- one-time weight preparation ---------------------------
def prepare_params(params, heads):
    """Hoisted out of the per-call path: transpose / q-scale fold / bf16 cast."""
    E = params["ln1_w"].shape[0]
    Dh = E // heads
    scale = 1.0 / math.sqrt(Dh)

    row = lambda v: v.reshape(1, -1).astype(jnp.float32)

    # Fold the 1/sqrt(Dh) q-scale into the Q columns of the fused QKV slab.
    col_scale = jnp.concatenate(
        [jnp.full((1, E), scale, jnp.float32), jnp.ones((1, 2 * E), jnp.float32)], axis=1)
    w_qkv = (params["in_proj_w"].T.astype(jnp.float32) * col_scale).astype(jnp.bfloat16)  # (E, 3E)
    b_qkv = row(params["in_proj_b"]) * col_scale                                          # (1, 3E)

    return {
        "ln1_w": row(params["ln1_w"]), "ln1_b": row(params["ln1_b"]),
        "w_qkv": w_qkv, "b_qkv": b_qkv,
        "wo": params["out_proj_w"].T.astype(jnp.bfloat16), "bo": row(params["out_proj_b"]),
        "ln2_w": row(params["ln2_w"]), "ln2_b": row(params["ln2_b"]),
        "w1": params["w1"].T.astype(jnp.bfloat16), "b1": row(params["b1"]),
        "w2": params["w2"].T.astype(jnp.bfloat16), "b2": row(params["b2"]),
    }


# ---------------------------------- wrapper -------------------------------------
def transformer_encoder_layer(z, prep, *, heads):
    """z: (S, B, E) float32 -> (S, B, E) float32. `prep` from prepare_params()."""
    S, B, E = z.shape
    N = S * B
    x = z.reshape(N, E)                       # native (S,B,E) order: free reshape, NO transpose

    # Block-diagonal attention bias (trace-time constant): row r belongs to batch r % B;
    # cross-batch pairs get -1e30 so exp() underflows to exactly 0 after max-subtract.
    rb = np.arange(N) % B
    attn_bias = jnp.asarray(
        np.where(rb[:, None] == rb[None, :], 0.0, -1e30).astype(np.float32))

    kernel = functools.partial(_encoder_layer_kernel, heads=heads, head_dim=E // heads)

    # Single invocation (no grid): all weights + activations + temps << VMEM; default
    # whole-array BlockSpecs map every operand into VMEM once.
    out = pl.pallas_call(
        kernel,
        out_shape=jax.ShapeDtypeStruct((N, E), jnp.float32),
        scratch_shapes=[pltpu.VMEM((N, E), jnp.float32)],
    )(
        x, attn_bias,
        prep["ln1_w"], prep["ln1_b"],
        prep["w_qkv"], prep["b_qkv"],
        prep["wo"], prep["bo"],
        prep["ln2_w"], prep["ln2_b"],
        prep["w1"], prep["b1"],
        prep["w2"], prep["b2"],
    )
    return out.reshape(S, B, E)               # free reshape, NO transpose


# ------------------------------ pure-JAX reference -------------------------------
def reference(z, p):
    S, B, E = z.shape
    H, Dh = HEADS, E // HEADS

    def ln(v, w, b):
        mu = v.mean(-1, keepdims=True)
        var = ((v - mu) ** 2).mean(-1, keepdims=True)
        return (v - mu) / jnp.sqrt(var + LN_EPS) * w + b

    zn = ln(z, p["ln1_w"], p["ln1_b"])
    qkv = zn @ p["in_proj_w"].T + p["in_proj_b"]             # (S, B, 3E)
    q, k, v = jnp.split(qkv, 3, axis=-1)
    qh = q.reshape(S, B, H, Dh).transpose(1, 2, 0, 3)        # (B, H, S, Dh)
    kh = k.reshape(S, B, H, Dh).transpose(1, 2, 0, 3)
    vh = v.reshape(S, B, H, Dh).transpose(1, 2, 0, 3)
    scores = (qh / math.sqrt(Dh)) @ kh.transpose(0, 1, 3, 2)
    probs = jax.nn.softmax(scores, axis=-1)
    o = probs @ vh                                           # (B, H, S, Dh)
    o = o.transpose(2, 0, 1, 3).reshape(S, B, E)
    attn = o @ p["out_proj_w"].T + p["out_proj_b"]
    z1 = z + attn
    zn2 = ln(z1, p["ln2_w"], p["ln2_b"])
    h = jax.nn.gelu(zn2 @ p["w1"].T + p["b1"], approximate=False)
    ff = h @ p["w2"].T + p["b2"]
    return z1 + ff


# ------------------------------------ main ---------------------------------------
if __name__ == "__main__":
    key = jax.random.PRNGKey(0)
    keys = jax.random.split(key, 16)

    E, F = HIDDEN, FFN
    params = {
        "ln1_w": jnp.ones((E,), jnp.float32),
        "ln1_b": jnp.zeros((E,), jnp.float32),
        "in_proj_w": 0.05 * jax.random.normal(keys[0], (3 * E, E), jnp.float32),
        "in_proj_b": 0.01 * jax.random.normal(keys[1], (3 * E,), jnp.float32),
        "out_proj_w": 0.05 * jax.random.normal(keys[2], (E, E), jnp.float32),
        "out_proj_b": 0.01 * jax.random.normal(keys[3], (E,), jnp.float32),
        "ln2_w": 1.0 + 0.02 * jax.random.normal(keys[4], (E,), jnp.float32),
        "ln2_b": 0.02 * jax.random.normal(keys[5], (E,), jnp.float32),
        "w1": 0.05 * jax.random.normal(keys[6], (F, E), jnp.float32),
        "b1": 0.01 * jax.random.normal(keys[7], (F,), jnp.float32),
        "w2": 0.05 * jax.random.normal(keys[8], (E, F), jnp.float32),
        "b2": 0.01 * jax.random.normal(keys[9], (E,), jnp.float32),
    }

    z = jax.random.normal(keys[10], (SEQ, BATCH, HIDDEN), jnp.float32)

    # One-time weight re-layout (transpose / q-scale fold / bf16 cast).
    prep = prepare_params(params, HEADS)

    fwd = jax.jit(functools.partial(transformer_encoder_layer, heads=HEADS))
    out = jax.block_until_ready(fwd(z, prep))

    ref = jax.block_until_ready(reference(z, params))
    # bf16 MXU operands (f32 accumulation) + approx reciprocal/erf -> loosened tolerance.
    np.testing.assert_allclose(np.asarray(out), np.asarray(ref), rtol=2e-2, atol=2e-2)

    print("KERNEL_OK")
</pallas_src>

<mosaic_0001>
module attributes {stable_mosaic.version = 11 : i64} {
  func.func @_encoder_layer_kernel(%arg0: memref<16x32xf32, #tpu.memory_space<vmem>>, %arg1: memref<16x16xf32, #tpu.memory_space<vmem>>, %arg2: memref<1x32xf32, #tpu.memory_space<vmem>>, %arg3: memref<1x32xf32, #tpu.memory_space<vmem>>, %arg4: memref<32x96xbf16, #tpu.memory_space<vmem>>, %arg5: memref<1x96xf32, #tpu.memory_space<vmem>>, %arg6: memref<32x32xbf16, #tpu.memory_space<vmem>>, %arg7: memref<1x32xf32, #tpu.memory_space<vmem>>, %arg8: memref<1x32xf32, #tpu.memory_space<vmem>>, %arg9: memref<1x32xf32, #tpu.memory_space<vmem>>, %arg10: memref<32x64xbf16, #tpu.memory_space<vmem>>, %arg11: memref<1x64xf32, #tpu.memory_space<vmem>>, %arg12: memref<64x32xbf16, #tpu.memory_space<vmem>>, %arg13: memref<1x32xf32, #tpu.memory_space<vmem>>, %arg14: memref<16x32xf32, #tpu.memory_space<vmem>>, %arg15: memref<16x32xf32, #tpu.memory_space<vmem>>) attributes {dimension_semantics = [], scalar_prefetch = 0 : i64, scratch_operands = 1 : i64, tpu.core_type = #tpu.core_type<tc>} {
    %c0 = arith.constant 0 : index
    %c0_0 = arith.constant 0 : index
    %0 = vector.load %arg0[%c0, %c0_0] : memref<16x32xf32, #tpu.memory_space<vmem>>, vector<16x32xf32>
    %c0_1 = arith.constant 0 : index
    %c0_2 = arith.constant 0 : index
    %1 = vector.load %arg2[%c0_1, %c0_2] : memref<1x32xf32, #tpu.memory_space<vmem>>, vector<1x32xf32>
    %2 = vector.shape_cast %1 : vector<1x32xf32> to vector<32xf32>
    %c0_3 = arith.constant 0 : index
    %c0_4 = arith.constant 0 : index
    %3 = vector.load %arg3[%c0_3, %c0_4] : memref<1x32xf32, #tpu.memory_space<vmem>>, vector<1x32xf32>
    %4 = vector.shape_cast %3 : vector<1x32xf32> to vector<32xf32>
    %cst = arith.constant dense<0.000000e+00> : vector<16xf32>
    %5 = vector.multi_reduction <add>, %0, %cst [1] : vector<16x32xf32> to vector<16xf32>
    %6 = vector.shape_cast %5 : vector<16xf32> to vector<16x1xf32>
    %cst_5 = arith.constant 3.200000e+01 : f32
    %7 = vector.broadcast %cst_5 : f32 to vector<16x1xf32>
    %8 = arith.divf %6, %7 : vector<16x1xf32>
    %9 = vector.broadcast %8 : vector<16x1xf32> to vector<16x32xf32>
    %10 = arith.subf %0, %9 : vector<16x32xf32>
    %11 = arith.mulf %10, %10 : vector<16x32xf32>
    %cst_6 = arith.constant dense<0.000000e+00> : vector<16xf32>
    %12 = vector.multi_reduction <add>, %11, %cst_6 [1] : vector<16x32xf32> to vector<16xf32>
    %13 = vector.shape_cast %12 : vector<16xf32> to vector<16x1xf32>
    %cst_7 = arith.constant 3.200000e+01 : f32
    %14 = vector.broadcast %cst_7 : f32 to vector<16x1xf32>
    %15 = arith.divf %13, %14 : vector<16x1xf32>
    %cst_8 = arith.constant 9.99999974E-6 : f32
    %16 = vector.broadcast %cst_8 : f32 to vector<16x1xf32>
    %17 = arith.addf %15, %16 : vector<16x1xf32>
    %18 = math.rsqrt %17 : vector<16x1xf32>
    %19 = vector.broadcast %18 : vector<16x1xf32> to vector<16x32xf32>
    %20 = arith.mulf %10, %19 : vector<16x32xf32>
    %21 = vector.shape_cast %2 : vector<32xf32> to vector<1x32xf32>
    %22 = vector.broadcast %21 : vector<1x32xf32> to vector<16x32xf32>
    %23 = arith.mulf %20, %22 : vector<16x32xf32>
    %24 = vector.shape_cast %4 : vector<32xf32> to vector<1x32xf32>
    %25 = vector.broadcast %24 : vector<1x32xf32> to vector<16x32xf32>
    %26 = arith.addf %23, %25 : vector<16x32xf32>
    %27 = arith.truncf %26 : vector<16x32xf32> to vector<16x32xbf16>
    %c0_9 = arith.constant 0 : index
    %c0_10 = arith.constant 0 : index
    %28 = vector.load %arg4[%c0_9, %c0_10] : memref<32x96xbf16, #tpu.memory_space<vmem>>, vector<32x96xbf16>
    %cst_11 = arith.constant dense<0.000000e+00> : vector<16x96xf32>
    %29 = tpu.matmul %27, %28, %cst_11 {dimension_numbers = #tpu.dot_dimension_numbers<[1], [0], [0], [1], [0, 0, 1, 1], [], []>} : vector<16x32xbf16>, vector<32x96xbf16>, vector<16x96xf32> -> vector<16x96xf32>
    %c0_12 = arith.constant 0 : index
    %c0_13 = arith.constant 0 : index
    %30 = vector.load %arg5[%c0_12, %c0_13] : memref<1x96xf32, #tpu.memory_space<vmem>>, vector<1x96xf32>
    %31 = vector.shape_cast %30 : vector<1x96xf32> to vector<96xf32>
    %32 = vector.shape_cast %31 : vector<96xf32> to vector<1x96xf32>
    %33 = vector.broadcast %32 : vector<1x96xf32> to vector<16x96xf32>
    %34 = arith.addf %29, %33 : vector<16x96xf32>
    %c0_14 = arith.constant 0 : index
    %c0_15 = arith.constant 0 : index
    %35 = vector.load %arg1[%c0_14, %c0_15] : memref<16x16xf32, #tpu.memory_space<vmem>>, vector<16x16xf32>
    %36 = vector.extract_strided_slice %34 {offsets = [0, 0], sizes = [16, 8], strides = [1, 1]} : vector<16x96xf32> to vector<16x8xf32>
    %37 = arith.truncf %36 : vector<16x8xf32> to vector<16x8xbf16>
    %38 = vector.extract_strided_slice %34 {offsets = [0, 32], sizes = [16, 8], strides = [1, 1]} : vector<16x96xf32> to vector<16x8xf32>
    %39 = arith.truncf %38 : vector<16x8xf32> to vector<16x8xbf16>
    %40 = vector.extract_strided_slice %34 {offsets = [0, 64], sizes = [16, 8], strides = [1, 1]} : vector<16x96xf32> to vector<16x8xf32>
    %41 = arith.truncf %40 : vector<16x8xf32> to vector<16x8xbf16>
    %cst_16 = arith.constant dense<0.000000e+00> : vector<16x16xf32>
    %42 = tpu.matmul %37, %39, %cst_16 {dimension_numbers = #tpu.dot_dimension_numbers<[1], [1], [0], [0], [0, 0, 1, 0], [], []>} : vector<16x8xbf16>, vector<16x8xbf16>, vector<16x16xf32> -> vector<16x16xf32>
    %43 = arith.addf %42, %35 : vector<16x16xf32>
    %cst_17 = arith.constant dense<0xFF800000> : vector<16xf32>
    %44 = vector.multi_reduction <maximumf>, %43, %cst_17 [1] : vector<16x16xf32> to vector<16xf32>
    %45 = vector.shape_cast %44 : vector<16xf32> to vector<16x1xf32>
    %46 = vector.broadcast %45 : vector<16x1xf32> to vector<16x16xf32>
    %47 = arith.subf %43, %46 : vector<16x16xf32>
    %48 = math.exp %47 : vector<16x16xf32>
    %cst_18 = arith.constant dense<0.000000e+00> : vector<16xf32>
    %49 = vector.multi_reduction <add>, %48, %cst_18 [1] : vector<16x16xf32> to vector<16xf32>
    %50 = vector.shape_cast %49 : vector<16xf32> to vector<16x1xf32>
    %51 = tpu.reciprocal %50 {approx = true} : vector<16x1xf32> -> vector<16x1xf32>
    %52 = vector.broadcast %51 : vector<16x1xf32> to vector<16x16xf32>
    %53 = arith.mulf %48, %52 : vector<16x16xf32>
    %54 = arith.truncf %53 : vector<16x16xf32> to vector<16x16xbf16>
    %cst_19 = arith.constant dense<0.000000e+00> : vector<16x8xf32>
    %55 = tpu.matmul %54, %41, %cst_19 {dimension_numbers = #tpu.dot_dimension_numbers<[1], [0], [0], [1], [0, 0, 1, 1], [], []>} : vector<16x16xbf16>, vector<16x8xbf16>, vector<16x8xf32> -> vector<16x8xf32>
    %c0_20 = arith.constant 0 : index
    %c0_21 = arith.constant 0 : index
    %56 = vector.load %arg15[%c0_20, %c0_21] : memref<16x32xf32, #tpu.memory_space<vmem>>, vector<16x8xf32>
    tpu.vector_store %arg15[%c0_20, %c0_21], %55 {strides = array<i32>} : memref<16x32xf32, #tpu.memory_space<vmem>>, vector<16x8xf32>,
    %57 = vector.extract_strided_slice %34 {offsets = [0, 8], sizes = [16, 8], strides = [1, 1]} : vector<16x96xf32> to vector<16x8xf32>
    %58 = arith.truncf %57 : vector<16x8xf32> to vector<16x8xbf16>
    %59 = vector.extract_strided_slice %34 {offsets = [0, 40], sizes = [16, 8], strides = [1, 1]} : vector<16x96xf32> to vector<16x8xf32>
    %60 = arith.truncf %59 : vector<16x8xf32> to vector<16x8xbf16>
    %61 = vector.extract_strided_slice %34 {offsets = [0, 72], sizes = [16, 8], strides = [1, 1]} : vector<16x96xf32> to vector<16x8xf32>
    %62 = arith.truncf %61 : vector<16x8xf32> to vector<16x8xbf16>
    %cst_22 = arith.constant dense<0.000000e+00> : vector<16x16xf32>
    %63 = tpu.matmul %58, %60, %cst_22 {dimension_numbers = #tpu.dot_dimension_numbers<[1], [1], [0], [0], [0, 0, 1, 0], [], []>} : vector<16x8xbf16>, vector<16x8xbf16>, vector<16x16xf32> -> vector<16x16xf32>
    %64 = arith.addf %63, %35 : vector<16x16xf32>
    %cst_23 = arith.constant dense<0xFF800000> : vector<16xf32>
    %65 = vector.multi_reduction <maximumf>, %64, %cst_23 [1] : vector<16x16xf32> to vector<16xf32>
    %66 = vector.shape_cast %65 : vector<16xf32> to vector<16x1xf32>
    %67 = vector.broadcast %66 : vector<16x1xf32> to vector<16x16xf32>
    %68 = arith.subf %64, %67 : vector<16x16xf32>
    %69 = math.exp %68 : vector<16x16xf32>
    %cst_24 = arith.constant dense<0.000000e+00> : vector<16xf32>
    %70 = vector.multi_reduction <add>, %69, %cst_24 [1] : vector<16x16xf32> to vector<16xf32>
    %71 = vector.shape_cast %70 : vector<16xf32> to vector<16x1xf32>
    %72 = tpu.reciprocal %71 {approx = true} : vector<16x1xf32> -> vector<16x1xf32>
    %73 = vector.broadcast %72 : vector<16x1xf32> to vector<16x16xf32>
    %74 = arith.mulf %69, %73 : vector<16x16xf32>
    %75 = arith.truncf %74 : vector<16x16xf32> to vector<16x16xbf16>
    %cst_25 = arith.constant dense<0.000000e+00> : vector<16x8xf32>
    %76 = tpu.matmul %75, %62, %cst_25 {dimension_numbers = #tpu.dot_dimension_numbers<[1], [0], [0], [1], [0, 0, 1, 1], [], []>} : vector<16x16xbf16>, vector<16x8xbf16>, vector<16x8xf32> -> vector<16x8xf32>
    %c0_26 = arith.constant 0 : index
    %c8 = arith.constant 8 : index
    %77 = vector.load %arg15[%c0_26, %c8] : memref<16x32xf32, #tpu.memory_space<vmem>>, vector<16x8xf32>
    tpu.vector_store %arg15[%c0_26, %c8], %76 {strides = array<i32>} : memref<16x32xf32, #tpu.memory_space<vmem>>, vector<16x8xf32>,
    %78 = vector.extract_strided_slice %34 {offsets = [0, 16], sizes = [16, 8], strides = [1, 1]} : vector<16x96xf32> to vector<16x8xf32>
    %79 = arith.truncf %78 : vector<16x8xf32> to vector<16x8xbf16>
    %80 = vector.extract_strided_slice %34 {offsets = [0, 48], sizes = [16, 8], strides = [1, 1]} : vector<16x96xf32> to vector<16x8xf32>
    %81 = arith.truncf %80 : vector<16x8xf32> to vector<16x8xbf16>
    %82 = vector.extract_strided_slice %34 {offsets = [0, 80], sizes = [16, 8], strides = [1, 1]} : vector<16x96xf32> to vector<16x8xf32>
    %83 = arith.truncf %82 : vector<16x8xf32> to vector<16x8xbf16>
    %cst_27 = arith.constant dense<0.000000e+00> : vector<16x16xf32>
    %84 = tpu.matmul %79, %81, %cst_27 {dimension_numbers = #tpu.dot_dimension_numbers<[1], [1], [0], [0], [0, 0, 1, 0], [], []>} : vector<16x8xbf16>, vector<16x8xbf16>, vector<16x16xf32> -> vector<16x16xf32>
    %85 = arith.addf %84, %35 : vector<16x16xf32>
    %cst_28 = arith.constant dense<0xFF800000> : vector<16xf32>
    %86 = vector.multi_reduction <maximumf>, %85, %cst_28 [1] : vector<16x16xf32> to vector<16xf32>
    %87 = vector.shape_cast %86 : vector<16xf32> to vector<16x1xf32>
    %88 = vector.broadcast %87 : vector<16x1xf32> to vector<16x16xf32>
    %89 = arith.subf %85, %88 : vector<16x16xf32>
    %90 = math.exp %89 : vector<16x16xf32>
    %cst_29 = arith.constant dense<0.000000e+00> : vector<16xf32>
    %91 = vector.multi_reduction <add>, %90, %cst_29 [1] : vector<16x16xf32> to vector<16xf32>
    %92 = vector.shape_cast %91 : vector<16xf32> to vector<16x1xf32>
    %93 = tpu.reciprocal %92 {approx = true} : vector<16x1xf32> -> vector<16x1xf32>
    %94 = vector.broadcast %93 : vector<16x1xf32> to vector<16x16xf32>
    %95 = arith.mulf %90, %94 : vector<16x16xf32>
    %96 = arith.truncf %95 : vector<16x16xf32> to vector<16x16xbf16>
    %cst_30 = arith.constant dense<0.000000e+00> : vector<16x8xf32>
    %97 = tpu.matmul %96, %83, %cst_30 {dimension_numbers = #tpu.dot_dimension_numbers<[1], [0], [0], [1], [0, 0, 1, 1], [], []>} : vector<16x16xbf16>, vector<16x8xbf16>, vector<16x8xf32> -> vector<16x8xf32>
    %c0_31 = arith.constant 0 : index
    %c16 = arith.constant 16 : index
    %98 = vector.load %arg15[%c0_31, %c16] : memref<16x32xf32, #tpu.memory_space<vmem>>, vector<16x8xf32>
    tpu.vector_store %arg15[%c0_31, %c16], %97 {strides = array<i32>} : memref<16x32xf32, #tpu.memory_space<vmem>>, vector<16x8xf32>,
    %99 = vector.extract_strided_slice %34 {offsets = [0, 24], sizes = [16, 8], strides = [1, 1]} : vector<16x96xf32> to vector<16x8xf32>
    %100 = arith.truncf %99 : vector<16x8xf32> to vector<16x8xbf16>
    %101 = vector.extract_strided_slice %34 {offsets = [0, 56], sizes = [16, 8], strides = [1, 1]} : vector<16x96xf32> to vector<16x8xf32>
    %102 = arith.truncf %101 : vector<16x8xf32> to vector<16x8xbf16>
    %103 = vector.extract_strided_slice %34 {offsets = [0, 88], sizes = [16, 8], strides = [1, 1]} : vector<16x96xf32> to vector<16x8xf32>
    %104 = arith.truncf %103 : vector<16x8xf32> to vector<16x8xbf16>
    %cst_32 = arith.constant dense<0.000000e+00> : vector<16x16xf32>
    %105 = tpu.matmul %100, %102, %cst_32 {dimension_numbers = #tpu.dot_dimension_numbers<[1], [1], [0], [0], [0, 0, 1, 0], [], []>} : vector<16x8xbf16>, vector<16x8xbf16>, vector<16x16xf32> -> vector<16x16xf32>
    %106 = arith.addf %105, %35 : vector<16x16xf32>
    %cst_33 = arith.constant dense<0xFF800000> : vector<16xf32>
    %107 = vector.multi_reduction <maximumf>, %106, %cst_33 [1] : vector<16x16xf32> to vector<16xf32>
    %108 = vector.shape_cast %107 : vector<16xf32> to vector<16x1xf32>
    %109 = vector.broadcast %108 : vector<16x1xf32> to vector<16x16xf32>
    %110 = arith.subf %106, %109 : vector<16x16xf32>
    %111 = math.exp %110 : vector<16x16xf32>
    %cst_34 = arith.constant dense<0.000000e+00> : vector<16xf32>
    %112 = vector.multi_reduction <add>, %111, %cst_34 [1] : vector<16x16xf32> to vector<16xf32>
    %113 = vector.shape_cast %112 : vector<16xf32> to vector<16x1xf32>
    %114 = tpu.reciprocal %113 {approx = true} : vector<16x1xf32> -> vector<16x1xf32>
    %115 = vector.broadcast %114 : vector<16x1xf32> to vector<16x16xf32>
    %116 = arith.mulf %111, %115 : vector<16x16xf32>
    %117 = arith.truncf %116 : vector<16x16xf32> to vector<16x16xbf16>
    %cst_35 = arith.constant dense<0.000000e+00> : vector<16x8xf32>
    %118 = tpu.matmul %117, %104, %cst_35 {dimension_numbers = #tpu.dot_dimension_numbers<[1], [0], [0], [1], [0, 0, 1, 1], [], []>} : vector<16x16xbf16>, vector<16x8xbf16>, vector<16x8xf32> -> vector<16x8xf32>
    %c0_36 = arith.constant 0 : index
    %c24 = arith.constant 24 : index
    %119 = vector.load %arg15[%c0_36, %c24] : memref<16x32xf32, #tpu.memory_space<vmem>>, vector<16x8xf32>
    tpu.vector_store %arg15[%c0_36, %c24], %118 {strides = array<i32>} : memref<16x32xf32, #tpu.memory_space<vmem>>, vector<16x8xf32>,
    %c0_37 = arith.constant 0 : index
    %c0_38 = arith.constant 0 : index
    %120 = vector.load %arg15[%c0_37, %c0_38] : memref<16x32xf32, #tpu.memory_space<vmem>>, vector<16x32xf32>
    %121 = arith.truncf %120 : vector<16x32xf32> to vector<16x32xbf16>
    %c0_39 = arith.constant 0 : index
    %c0_40 = arith.constant 0 : index
    %122 = vector.load %arg6[%c0_39, %c0_40] : memref<32x32xbf16, #tpu.memory_space<vmem>>, vector<32x32xbf16>
    %cst_41 = arith.constant dense<0.000000e+00> : vector<16x32xf32>
    %123 = tpu.matmul %121, %122, %cst_41 {dimension_numbers = #tpu.dot_dimension_numbers<[1], [0], [0], [1], [0, 0, 1, 1], [], []>} : vector<16x32xbf16>, vector<32x32xbf16>, vector<16x32xf32> -> vector<16x32xf32>
    %c0_42 = arith.constant 0 : index
    %c0_43 = arith.constant 0 : index
    %124 = vector.load %arg7[%c0_42, %c0_43] : memref<1x32xf32, #tpu.memory_space<vmem>>, vector<1x32xf32>
    %125 = vector.shape_cast %124 : vector<1x32xf32> to vector<32xf32>
    %126 = vector.shape_cast %125 : vector<32xf32> to vector<1x32xf32>
    %127 = vector.broadcast %126 : vector<1x32xf32> to vector<16x32xf32>
    %128 = arith.addf %123, %127 : vector<16x32xf32>
    %129 = arith.addf %0, %128 : vector<16x32xf32>
    %c0_44 = arith.constant 0 : index
    %c0_45 = arith.constant 0 : index
    %130 = vector.load %arg8[%c0_44, %c0_45] : memref<1x32xf32, #tpu.memory_space<vmem>>, vector<1x32xf32>
    %131 = vector.shape_cast %130 : vector<1x32xf32> to vector<32xf32>
    %c0_46 = arith.constant 0 : index
    %c0_47 = arith.constant 0 : index
    %132 = vector.load %arg9[%c0_46, %c0_47] : memref<1x32xf32, #tpu.memory_space<vmem>>, vector<1x32xf32>
    %133 = vector.shape_cast %132 : vector<1x32xf32> to vector<32xf32>
    %cst_48 = arith.constant dense<0.000000e+00> : vector<16xf32>
    %134 = vector.multi_reduction <add>, %129, %cst_48 [1] : vector<16x32xf32> to vector<16xf32>
    %135 = vector.shape_cast %134 : vector<16xf32> to vector<16x1xf32>
    %cst_49 = arith.constant 3.200000e+01 : f32
    %136 = vector.broadcast %cst_49 : f32 to vector<16x1xf32>
    %137 = arith.divf %135, %136 : vector<16x1xf32>
    %138 = vector.broadcast %137 : vector<16x1xf32> to vector<16x32xf32>
    %139 = arith.subf %129, %138 : vector<16x32xf32>
    %140 = arith.mulf %139, %139 : vector<16x32xf32>
    %cst_50 = arith.constant dense<0.000000e+00> : vector<16xf32>
    %141 = vector.multi_reduction <add>, %140, %cst_50 [1] : vector<16x32xf32> to vector<16xf32>
    %142 = vector.shape_cast %141 : vector<16xf32> to vector<16x1xf32>
    %cst_51 = arith.constant 3.200000e+01 : f32
    %143 = vector.broadcast %cst_51 : f32 to vector<16x1xf32>
    %144 = arith.divf %142, %143 : vector<16x1xf32>
    %cst_52 = arith.constant 9.99999974E-6 : f32
    %145 = vector.broadcast %cst_52 : f32 to vector<16x1xf32>
    %146 = arith.addf %144, %145 : vector<16x1xf32>
    %147 = math.rsqrt %146 : vector<16x1xf32>
    %148 = vector.broadcast %147 : vector<16x1xf32> to vector<16x32xf32>
    %149 = arith.mulf %139, %148 : vector<16x32xf32>
    %150 = vector.shape_cast %131 : vector<32xf32> to vector<1x32xf32>
    %151 = vector.broadcast %150 : vector<1x32xf32> to vector<16x32xf32>
    %152 = arith.mulf %149, %151 : vector<16x32xf32>
    %153 = vector.shape_cast %133 : vector<32xf32> to vector<1x32xf32>
    %154 = vector.broadcast %153 : vector<1x32xf32> to vector<16x32xf32>
    %155 = arith.addf %152, %154 : vector<16x32xf32>
    %156 = arith.truncf %155 : vector<16x32xf32> to vector<16x32xbf16>
    %c0_53 = arith.constant 0 : index
    %c0_54 = arith.constant 0 : index
    %157 = vector.load %arg10[%c0_53, %c0_54] : memref<32x64xbf16, #tpu.memory_space<vmem>>, vector<32x64xbf16>
    %cst_55 = arith.constant dense<0.000000e+00> : vector<16x64xf32>
    %158 = tpu.matmul %156, %157, %cst_55 {dimension_numbers = #tpu.dot_dimension_numbers<[1], [0], [0], [1], [0, 0, 1, 1], [], []>} : vector<16x32xbf16>, vector<32x64xbf16>, vector<16x64xf32> -> vector<16x64xf32>
    %c0_56 = arith.constant 0 : index
    %c0_57 = arith.constant 0 : index
    %159 = vector.load %arg11[%c0_56, %c0_57] : memref<1x64xf32, #tpu.memory_space<vmem>>, vector<1x64xf32>
    %160 = vector.shape_cast %159 : vector<1x64xf32> to vector<64xf32>
    %161 = vector.shape_cast %160 : vector<64xf32> to vector<1x64xf32>
    %162 = vector.broadcast %161 : vector<1x64xf32> to vector<16x64xf32>
    %163 = arith.addf %158, %162 : vector<16x64xf32>
    %cst_58 = arith.constant 5.000000e-01 : f32
    %164 = vector.broadcast %cst_58 : f32 to vector<16x64xf32>
    %165 = arith.mulf %164, %163 : vector<16x64xf32>
    %cst_59 = arith.constant 0.707106769 : f32
    %166 = vector.broadcast %cst_59 : f32 to vector<16x64xf32>
    %167 = arith.mulf %163, %166 : vector<16x64xf32>
    %cst_60 = arith.constant 0.000000e+00 : f32
    %168 = vector.broadcast %cst_60 : f32 to vector<16x64xf32>
    %169 = arith.cmpf oge, %167, %168 : vector<16x64xf32>
    %cst_61 = arith.constant 1.000000e+00 : f32
    %cst_62 = arith.constant -1.000000e+00 : f32
    %170 = vector.broadcast %cst_61 : f32 to vector<16x64xf32>
    %171 = vector.broadcast %cst_62 : f32 to vector<16x64xf32>
    %172 = arith.select %169, %170, %171 : vector<16x64xi1>, vector<16x64xf32>
    %173 = math.absf %167 : vector<16x64xf32>
    %cst_63 = arith.constant 0.327591091 : f32
    %174 = vector.broadcast %cst_63 : f32 to vector<16x64xf32>
    %175 = arith.mulf %174, %173 : vector<16x64xf32>
    %cst_64 = arith.constant 1.000000e+00 : f32
    %176 = vector.broadcast %cst_64 : f32 to vector<16x64xf32>
    %177 = arith.addf %176, %175 : vector<16x64xf32>
    %178 = tpu.reciprocal %177 {approx = true} : vector<16x64xf32> -> vector<16x64xf32>
    %cst_65 = arith.constant 1.06140542 : f32
    %179 = vector.broadcast %cst_65 : f32 to vector<16x64xf32>
    %180 = arith.mulf %179, %178 : vector<16x64xf32>
    %cst_66 = arith.constant -1.45315206 : f32
    %181 = vector.broadcast %cst_66 : f32 to vector<16x64xf32>
    %182 = arith.addf %180, %181 : vector<16x64xf32>
    %183 = arith.mulf %182, %178 : vector<16x64xf32>
    %cst_67 = arith.constant 1.42141378 : f32
    %184 = vector.broadcast %cst_67 : f32 to vector<16x64xf32>
    %185 = arith.addf %183, %184 : vector<16x64xf32>
    %186 = arith.mulf %185, %178 : vector<16x64xf32>
    %cst_68 = arith.constant -0.284496725 : f32
    %187 = vector.broadcast %cst_68 : f32 to vector<16x64xf32>
    %188 = arith.addf %186, %187 : vector<16x64xf32>
    %189 = arith.mulf %188, %178 : vector<16x64xf32>
    %cst_69 = arith.constant 0.254829586 : f32
    %190 = vector.broadcast %cst_69 : f32 to vector<16x64xf32>
    %191 = arith.addf %189, %190 : vector<16x64xf32>
    %192 = arith.mulf %191, %178 : vector<16x64xf32>
    %cst_70 = arith.constant 0.000000e+00 : f32
    %193 = vector.broadcast %cst_70 : f32 to vector<16x64xf32>
    %194 = arith.subf %193, %173 : vector<16x64xf32>
    %195 = arith.mulf %194, %173 : vector<16x64xf32>
    %196 = math.exp %195 : vector<16x64xf32>
    %197 = arith.mulf %192, %196 : vector<16x64xf32>
    %cst_71 = arith.constant 1.000000e+00 : f32
    %198 = vector.broadcast %cst_71 : f32 to vector<16x64xf32>
    %199 = arith.subf %198, %197 : vector<16x64xf32>
    %200 = arith.mulf %172, %199 : vector<16x64xf32>
    %cst_72 = arith.constant 1.000000e+00 : f32
    %201 = vector.broadcast %cst_72 : f32 to vector<16x64xf32>
    %202 = arith.addf %201, %200 : vector<16x64xf32>
    %203 = arith.mulf %165, %202 : vector<16x64xf32>
    %204 = arith.truncf %203 : vector<16x64xf32> to vector<16x64xbf16>
    %c0_73 = arith.constant 0 : index
    %c0_74 = arith.constant 0 : index
    %205 = vector.load %arg12[%c0_73, %c0_74] : memref<64x32xbf16, #tpu.memory_space<vmem>>, vector<64x32xbf16>
    %cst_75 = arith.constant dense<0.000000e+00> : vector<16x32xf32>
    %206 = tpu.matmul %204, %205, %cst_75 {dimension_numbers = #tpu.dot_dimension_numbers<[1], [0], [0], [1], [0, 0, 1, 1], [], []>} : vector<16x64xbf16>, vector<64x32xbf16>, vector<16x32xf32> -> vector<16x32xf32>
    %c0_76 = arith.constant 0 : index
    %c0_77 = arith.constant 0 : index
    %207 = vector.load %arg13[%c0_76, %c0_77] : memref<1x32xf32, #tpu.memory_space<vmem>>, vector<1x32xf32>
    %208 = vector.shape_cast %207 : vector<1x32xf32> to vector<32xf32>
    %209 = vector.shape_cast %208 : vector<32xf32> to vector<1x32xf32>
    %210 = vector.broadcast %209 : vector<1x32xf32> to vector<16x32xf32>
    %211 = arith.addf %206, %210 : vector<16x32xf32>
    %212 = arith.addf %129, %211 : vector<16x32xf32>
    %c0_78 = arith.constant 0 : index
    %c0_79 = arith.constant 0 : index
    %213 = vector.load %arg14[%c0_78, %c0_79] : memref<16x32xf32, #tpu.memory_space<vmem>>, vector<16x32xf32>
    tpu.vector_store %arg14[%c0_78, %c0_79], %212 {strides = array<i32>} : memref<16x32xf32, #tpu.memory_space<vmem>>, vector<16x32xf32>,
    return
  }
}

</mosaic_0001>

<llo_original>
// kernel: transformer_encoder_layer.1
$region0: #{transformer_encoder_layer.1}
  #allocation0 [shape = 'u32[]', space=smem, size = 0x4, offset = 0x4, fixed_abs, tag = 'smem constant byte address 0x4 - core index']
  #allocation1 [shape = 'u32[144,128]{1,0:T(1,128)}', space=vmem, size = 0x12000, scoped, tag = 'internal scratch']
  #allocation2 [shape = 'f32[16,32]{1,0:T(8,128)}', space=vmem, size = 0x2000, scoped, tag = 'scratch operand']
  %s0 = inlined_call_operand.vmem [shape: f32[16,32], index: 0, kind: input, shape index: {}]
  %s1 = inlined_call_operand.vmem [shape: f32[16,16], index: 1, kind: input, shape index: {}]
  %s2 = inlined_call_operand.vmem [shape: f32[1,32], index: 2, kind: input, shape index: {}]
  %s3 = inlined_call_operand.hbm [shape: f32[1,32], index: 3, kind: input, shape index: {}]
  %s4 = inlined_call_operand.vmem [shape: bf16[32,96], index: 4, kind: input, shape index: {}]
  %s5 = inlined_call_operand.hbm [shape: f32[1,96], index: 5, kind: input, shape index: {}]
  %s6 = inlined_call_operand.vmem [shape: bf16[32,32], index: 6, kind: input, shape index: {}]
  %s7 = inlined_call_operand.hbm [shape: f32[1,32], index: 7, kind: input, shape index: {}]
  %s8 = inlined_call_operand.hbm [shape: f32[1,32], index: 8, kind: input, shape index: {}]
  %s9 = inlined_call_operand.hbm [shape: f32[1,32], index: 9, kind: input, shape index: {}]
  %s10 = inlined_call_operand.vmem [shape: bf16[32,64], index: 10, kind: input, shape index: {}]
  %s11 = inlined_call_operand.hbm [shape: f32[1,64], index: 11, kind: input, shape index: {}]
  %s12 = inlined_call_operand.vmem [shape: bf16[64,32], index: 12, kind: input, shape index: {}]
  %s13 = inlined_call_operand.hbm [shape: f32[1,32], index: 13, kind: input, shape index: {}]
  %s14 = inlined_call_operand.hbm [shape: f32[16,32], index: 14, kind: output, shape index: {}]
  %s15 = sld [smem:[#allocation0]]
  $region94: #{transformer_encoder_layer.1} parent=0
    _
  %s17 = ssub.s32 1, %s15
  %s18 = scalar_select 0, %s17, %s15
  $region1: #{transformer_encoder_layer.1} parent=0
    #allocation3 [shape = 'u8[512]{0}', space=vmem, size = 0x400, scoped, tag = 'input window, operand 3, single buffered']
    #allocation4 [shape = 's32[1]{0}', space=sflag, size = 0x4, scoped, tag = 'scoped memory for transformer_encoder_layer.1']
    #allocation5 [shape = 's32[1]{0}', space=sflag, size = 0x4, scoped, tag = 'scoped memory for transformer_encoder_layer.1']
    #allocation6 [shape = 'u8[512]{0}', space=vmem, size = 0x400, scoped, tag = 'input window, operand 5, single buffered']
    #allocation7 [shape = 's32[1]{0}', space=sflag, size = 0x4, scoped, tag = 'scoped memory for transformer_encoder_layer.1']
    #allocation8 [shape = 'u8[512]{0}', space=vmem, size = 0x400, scoped, tag = 'input window, operand 7, single buffered']
    #allocation9 [shape = 'u8[512]{0}', space=vmem, size = 0x400, scoped, tag = 'input window, operand 8, single buffered']
    #allocation10 [shape = 's32[1]{0}', space=sflag, size = 0x4, scoped, tag = 'scoped memory for transformer_encoder_layer.1']
    #allocation11 [shape = 'u8[512]{0}', space=vmem, size = 0x400, scoped, tag = 'input window, operand 9, single buffered']
    #allocation12 [shape = 'u8[512]{0}', space=vmem, size = 0x400, scoped, tag = 'input window, operand 11, single buffered']
    #allocation13 [shape = 's32[1]{0}', space=sflag, size = 0x4, scoped, tag = 'scoped memory for transformer_encoder_layer.1']
    #allocation14 [shape = 'u8[512]{0}', space=vmem, size = 0x400, scoped, tag = 'input window, operand 13, single buffered']
    #allocation15 [shape = 'u8[8192]{0}', space=vmem, size = 0x2000, scoped, tag = 'output window, operand 0, single buffered']
    %19 = vsyncpa [#allocation4], 0
    %20 = vsyncpa [#allocation7], 0
    %21 = vsyncpa [#allocation10], 0
    %22 = vsyncpa [#allocation13], 0
    %23 = vsyncpa [#allocation5], 0
    // Predicated region
    $region2: #{transformer_encoder_layer.1} parent=1 // pred_check
      _
    $region3: #{transformer_encoder_layer.1} parent=1 // pred_check_branch
      %25 = sbr.rel (0) target = $region5
    $region4: #{transformer_encoder_layer.1} parent=1 // pred_region
      _
    $region5: #{transformer_encoder_layer.1} parent=1 // pred_fallthru
      _
    // Predicated region
    $region6: #{transformer_encoder_layer.1} parent=1 // pred_check
      _
    $region7: #{transformer_encoder_layer.1} parent=1 // pred_check_branch
      %27 = sbr.rel (0) target = $region9
    $region8: #{transformer_encoder_layer.1} parent=1 // pred_region
      _
    $region9: #{transformer_encoder_layer.1} parent=1 // pred_fallthru
      _
    // Predicated region
    $region10: #{transformer_encoder_layer.1} parent=1 // pred_check
      _
    $region11: #{transformer_encoder_layer.1} parent=1 // pred_check_branch
      %29 = sbr.rel (0) target = $region13
    $region12: #{transformer_encoder_layer.1} parent=1 // pred_region
      _
    $region13: #{transformer_encoder_layer.1} parent=1 // pred_fallthru
      _
    // Predicated region
    $region14: #{transformer_encoder_layer.1} parent=1 // pred_check
      _
    $region15: #{transformer_encoder_layer.1} parent=1 // pred_check_branch
      %31 = sbr.rel (0) target = $region17
    $region16: #{transformer_encoder_layer.1} parent=1 // pred_region
      %s33 = ssub.s32 16, 16
      %34 = vsyncadd [#allocation4], %s33
      %s36 = sshll.u32 [#allocation3], 4
      %s37 = int_to_ptr.vmem [resolvable:$true] %s36
      %39 = dma.hbm_to_vmem [thread:$0]  %s3, 16, %s37, [#allocation4]
    $region17: #{transformer_encoder_layer.1} parent=1 // pred_fallthru
      _
    // Predicated region
    $region18: #{transformer_encoder_layer.1} parent=1 // pred_check
      _
    $region19: #{transformer_encoder_layer.1} parent=1 // pred_check_branch
      %41 = sbr.rel (0) target = $region21
    $region20: #{transformer_encoder_layer.1} parent=1 // pred_region
      _
    $region21: #{transformer_encoder_layer.1} parent=1 // pred_fallthru
      _
    // Predicated region
    $region22: #{transformer_encoder_layer.1} parent=1 // pred_check
      _
    $region23: #{transformer_encoder_layer.1} parent=1 // pred_check_branch
      %43 = sbr.rel (0) target = $region25
    $region24: #{transformer_encoder_layer.1} parent=1 // pred_region
      %s45 = ssub.s32 16, 16
      %46 = vsyncadd [#allocation7], %s45
      %s48 = sshll.u32 [#allocation6], 4
      %s49 = int_to_ptr.vmem [resolvable:$true] %s48
      %51 = dma.hbm_to_vmem [thread:$0]  %s5, 16, %s49, [#allocation7]
    $region25: #{transformer_encoder_layer.1} parent=1 // pred_fallthru
      _
    // Predicated region
    $region26: #{transformer_encoder_layer.1} parent=1 // pred_check
      _
    $region27: #{transformer_encoder_layer.1} parent=1 // pred_check_branch
      %53 = sbr.rel (0) target = $region29
    $region28: #{transformer_encoder_layer.1} parent=1 // pred_region
      _
    $region29: #{transformer_encoder_layer.1} parent=1 // pred_fallthru
      _
    // Predicated region
    $region30: #{transformer_encoder_layer.1} parent=1 // pred_check
      _
    $region31: #{transformer_encoder_layer.1} parent=1 // pred_check_branch
      %55 = sbr.rel (0) target = $region33
    $region32: #{transformer_encoder_layer.1} parent=1 // pred_region
      %s57 = ssub.s32 16, 16
      %58 = vsyncadd [#allocation7], %s57
      %s60 = sshll.u32 [#allocation8], 4
      %s61 = int_to_ptr.vmem [resolvable:$true] %s60
      %63 = dma.hbm_to_vmem [thread:$0]  %s7, 16, %s61, [#allocation7]
    $region33: #{transformer_encoder_layer.1} parent=1 // pred_fallthru
      _
    // Predicated region
    $region34: #{transformer_encoder_layer.1} parent=1 // pred_check
      _
    $region35: #{transformer_encoder_layer.1} parent=1 // pred_check_branch
      %65 = sbr.rel (0) target = $region37
    $region36: #{transformer_encoder_layer.1} parent=1 // pred_region
      %s67 = ssub.s32 16, 16
      %68 = vsyncadd [#allocation10], %s67
      %s70 = sshll.u32 [#allocation9], 4
      %s71 = int_to_ptr.vmem [resolvable:$true] %s70
      %73 = dma.hbm_to_vmem [thread:$0]  %s8, 16, %s71, [#allocation10]
    $region37: #{transformer_encoder_layer.1} parent=1 // pred_fallthru
      _
    // Predicated region
    $region38: #{transformer_encoder_layer.1} parent=1 // pred_check
      _
    $region39: #{transformer_encoder_layer.1} parent=1 // pred_check_branch
      %75 = sbr.rel (0) target = $region41
    $region40: #{transformer_encoder_layer.1} parent=1 // pred_region
      %s77 = ssub.s32 16, 16
      %78 = vsyncadd [#allocation10], %s77
      %s80 = sshll.u32 [#allocation11], 4
      %s81 = int_to_ptr.vmem [resolvable:$true] %s80
      %83 = dma.hbm_to_vmem [thread:$0]  %s9, 16, %s81, [#allocation10]
    $region41: #{transformer_encoder_layer.1} parent=1 // pred_fallthru
      _
    // Predicated region
    $region42: #{transformer_encoder_layer.1} parent=1 // pred_check
      _
    $region43: #{transformer_encoder_layer.1} parent=1 // pred_check_branch
      %85 = sbr.rel (0) target = $region45
    $region44: #{transformer_encoder_layer.1} parent=1 // pred_region
      _
    $region45: #{transformer_encoder_layer.1} parent=1 // pred_fallthru
      _
    // Predicated region
    $region46: #{transformer_encoder_layer.1} parent=1 // pred_check
      _
    $region47: #{transformer_encoder_layer.1} parent=1 // pred_check_branch
      %87 = sbr.rel (0) target = $region49
    $region48: #{transformer_encoder_layer.1} parent=1 // pred_region
      %s89 = ssub.s32 16, 16
      %90 = vsyncadd [#allocation13], %s89
      %s92 = sshll.u32 [#allocation12], 4
      %s93 = int_to_ptr.vmem [resolvable:$true] %s92
      %95 = dma.hbm_to_vmem [thread:$0]  %s11, 16, %s93, [#allocation13]
    $region49: #{transformer_encoder_layer.1} parent=1 // pred_fallthru
      _
    // Predicated region
    $region50: #{transformer_encoder_layer.1} parent=1 // pred_check
      _
    $region51: #{transformer_encoder_layer.1} parent=1 // pred_check_branch
      %97 = sbr.rel (0) target = $region53
    $region52: #{transformer_encoder_layer.1} parent=1 // pred_region
      _
    $region53: #{transformer_encoder_layer.1} parent=1 // pred_fallthru
      _
    // Predicated region
    $region54: #{transformer_encoder_layer.1} parent=1 // pred_check
      _
    $region55: #{transformer_encoder_layer.1} parent=1 // pred_check_branch
      %99 = sbr.rel (0) target = $region57
    $region56: #{transformer_encoder_layer.1} parent=1 // pred_region
      %s101 = ssub.s32 16, 16
      %102 = vsyncadd [#allocation13], %s101
      %s104 = sshll.u32 [#allocation14], 4
      %s105 = int_to_ptr.vmem [resolvable:$true] %s104
      %107 = dma.hbm_to_vmem [thread:$0]  %s13, 16, %s105, [#allocation13]
    $region57: #{transformer_encoder_layer.1} parent=1 // pred_fallthru
      _
    // Predicated region
    $region58: #{transformer_encoder_layer.1} parent=1 // pred_check
      _
    $region59: #{transformer_encoder_layer.1} parent=1 // pred_check_branch
      %109 = sbr.rel (0) target = $region61
    $region60: #{transformer_encoder_layer.1} parent=1 // pred_region
      %110 = dma.done [#allocation4], 16
    $region61: #{transformer_encoder_layer.1} parent=1 // pred_fallthru
      _
    // Predicated region
    $region62: #{transformer_encoder_layer.1} parent=1 // pred_check
      _
    $region63: #{transformer_encoder_layer.1} parent=1 // pred_check_branch
      %112 = sbr.rel (0) target = $region65
    $region64: #{transformer_encoder_layer.1} parent=1 // pred_region
      %113 = dma.done [#allocation7], 16
    $region65: #{transformer_encoder_layer.1} parent=1 // pred_fallthru
      _
    // Predicated region
    $region66: #{transformer_encoder_layer.1} parent=1 // pred_check
      _
    $region67: #{transformer_encoder_layer.1} parent=1 // pred_check_branch
      %115 = sbr.rel (0) target = $region69
    $region68: #{transformer_encoder_layer.1} parent=1 // pred_region
      %116 = dma.done [#allocation7], 16
    $region69: #{transformer_encoder_layer.1} parent=1 // pred_fallthru
      _
    // Predicated region
    $region70: #{transformer_encoder_layer.1} parent=1 // pred_check
      _
    $region71: #{transformer_encoder_layer.1} parent=1 // pred_check_branch
      %118 = sbr.rel (0) target = $region73
    $region72: #{transformer_encoder_layer.1} parent=1 // pred_region
      %119 = dma.done [#allocation10], 16
    $region73: #{transformer_encoder_layer.1} parent=1 // pred_fallthru
      _
    // Predicated region
    $region74: #{transformer_encoder_layer.1} parent=1 // pred_check
      _
    $region75: #{transformer_encoder_layer.1} parent=1 // pred_check_branch
      %121 = sbr.rel (0) target = $region77
    $region76: #{transformer_encoder_layer.1} parent=1 // pred_region
      %122 = dma.done [#allocation10], 16
    $region77: #{transformer_encoder_layer.1} parent=1 // pred_fallthru
      _
    // Predicated region
    $region78: #{transformer_encoder_layer.1} parent=1 // pred_check
      _
    $region79: #{transformer_encoder_layer.1} parent=1 // pred_check_branch
      %124 = sbr.rel (0) target = $region81
    $region80: #{transformer_encoder_layer.1} parent=1 // pred_region
      %125 = dma.done [#allocation13], 16
    $region81: #{transformer_encoder_layer.1} parent=1 // pred_fallthru
      _
    // Predicated region
    $region82: #{transformer_encoder_layer.1} parent=1 // pred_check
      _
    $region83: #{transformer_encoder_layer.1} parent=1 // pred_check_branch
      %127 = sbr.rel (0) target = $region85
    $region84: #{transformer_encoder_layer.1} parent=1 // pred_region
      %128 = dma.done [#allocation13], 16
    $region85: #{transformer_encoder_layer.1} parent=1 // pred_fallthru
      _
    %v130 = vld [vmem:[%s0] sm:$0xff]
    %v131 = vld [vmem:[%s0 + $0x8] sm:$0xff]
    %v132 = vld [vmem:[%s2] sm:$0x1]
    %v133 = vld [vmem:[#allocation3] sm:$0x1]
    %vm134 = vcmask 261120
    %v135 = vsel %vm134, %v130, 0.0
    %136 = vadd.xlane.f32.xlu0 %v135
    %v137 = vpop.xlane.xlu0 %136
    %v138 = vsel %vm134, %v131, 0.0
    %139 = vadd.xlane.f32.xlu0 %v138
    %v140 = vpop.xlane.xlu0 %139
    %v141 = vrcp.pop 32.0
    %v142 = vmul.f32 %v137, %v141
    %v143 = vmul.f32 %v140, %v141
    %v144 = vsub.f32 %v130, %v142
    %v145 = vsub.f32 %v131, %v143
    %v146 = vmul.f32 %v144, %v144
    %v147 = vmul.f32 %v145, %v145
    %v148 = vsel %vm134, %v146, 0.0
    %149 = vadd.xlane.f32.xlu0 %v148
    %v150 = vpop.xlane.xlu0 %149
    %v151 = vsel %vm134, %v147, 0.0
    %152 = vadd.xlane.f32.xlu0 %v151
    %v153 = vpop.xlane.xlu0 %152
    %v154 = vmul.f32 %v150, %v141
    %v155 = vmul.f32 %v153, %v141
    %v156 = vadd.f32 %v154, 1e-05
    %v157 = vadd.f32 %v155, 1e-05
    %v158 = vrsqrt.pop %v156
    %v159 = vrsqrt.pop %v157
    %v160 = vmul.f32 %v144, %v158
    %v161 = vmul.f32 %v145, %v159
    %v163 = vlaneseq
    %v164 = vshrl.u32 %v163, 7
    %v165 = vsub.s32 0, %v164
    %v166 = vrot.slane %v132, %v165
    %v168 = vmul.f32 %v160, %v166
    %v169 = vmul.f32 %v161, %v166
    %v171 = vlaneseq
    %v172 = vshrl.u32 %v171, 7
    %v173 = vsub.s32 0, %v172
    %v174 = vrot.slane %v133, %v173
    %v176 = vadd.f32 %v168, %v174
    %v177 = vadd.f32 %v169, %v174
    %v178 = vpack.c.bf16 %v177, %v176
    %v179 = vld [vmem:[%s4] sm:$0xf]
    %v180 = vld [vmem:[%s4 + $0x4] sm:$0xf]
    %v181 = vld [vmem:[%s4 + $0x8] sm:$0xf]
    %v182 = vld [vmem:[%s4 + $0xc] sm:$0xf]
    %v183 = vld [vmem:[#allocation6] sm:$0x1]
    %v185 = vlaneseq
    %v186 = vshrl.u32 %v185, 7
    %v187 = vsub.s32 0, %v186
    %v188 = vrot.slane %v183, %v187
    %v194 = vunpack.c.l.b16 %v179
    %v195 = vunpack.c.l.b16 %v180
    %v196 = vunpack.c.l.b16 %v181
    %v197 = vunpack.c.l.b16 %v182
    %v198 = vpack.c.b16 %v195, %v194
    %v199 = vpack.c.b16 %v197, %v196
    %v203 = vsel %vm134, %v178, 0
    %205 = vmatprep.subr.bf16.mxu0 0
    %206 = vmatpush1.bf16.msra.mxu0 %v198
    %207 = vmatprep.subr.bf16.mxu0 0
    %208 = vmatpush1.bf16.msra.mxu0 %v199
    %209 = vmatprep.subr.bf16.mxu0 0
    %210 = vmatpush1.bf16.msra.mxu0 0
    %211 = vmatprep.subr.bf16.mxu0 0
    %212 = vmatpush1.bf16.msra.mxu0 0
    %213 = vmatprep.subr.bf16.mxu0 0
    %214 = vmatpush1.bf16.msra.mxu0 0
    %215 = vmatprep.subr.bf16.mxu0 0
    %216 = vmatpush1.bf16.msra.mxu0 0
    %217 = vmatprep.subr.bf16.mxu0 0
    %218 = vmatpush1.bf16.msra.mxu0 0
    %219 = vmatprep.subr.bf16.mxu0 0
    %220 = vmatpush1.bf16.msra.mxu0 0
    %221 = vmatprep.subr.bf16.mxu0 0
    %222 = vmatpush1.bf16.msra.mxu0 0
    %223 = vmatprep.subr.bf16.mxu0 0
    %224 = vmatpush1.bf16.msra.mxu0 0
    %225 = vmatprep.subr.bf16.mxu0 0
    %226 = vmatpush1.bf16.msra.mxu0 0
    %227 = vmatprep.subr.bf16.mxu0 0
    %228 = vmatpush1.bf16.msra.mxu0 0
    %229 = vmatprep.subr.bf16.mxu0 0
    %230 = vmatpush1.bf16.msra.mxu0 0
    %231 = vmatprep.subr.bf16.mxu0 0
    %232 = vmatpush1.bf16.msra.mxu0 0
    %233 = vmatprep.subr.bf16.mxu0 0
    %234 = vmatpush1.bf16.msra.mxu0 0
    %235 = vmatprep.subr.bf16.mxu0 0
    %236 = vmatpush1.bf16.msra.mxu0 0
    %237 = vmatprep.mubr.bf16.mxu0 0
    %238 = vmatmul.mubr.bf16.gmra.mrb[0].mxu0 %v203
    %v239 = vpop.f32.mrb[0].mxu0
    %v240 = vadd.f32 %v188, %v239
    %v241 = vpop.f32.mrb[0].mxu0
    %v242 = vpop.f32.mrb[0].mxu0
    %v243 = vadd.f32 %v188, %v242
    %v244 = vpop.f32.mrb[0].mxu0
    %245 = vdwg.mxu0
    %v246 = vld [vmem:[%s1] sm:$0xff]
    %v247 = vld [vmem:[%s1 + $0x8] sm:$0xff]
    %v248 = vpack.c.bf16 %v243, %v240
    %250 = vrot.lane.b32.xlu0 %v248, 96
    %v251 = vpop.permute.xlu0 %250
    %vm252 = vcmask 64512
    %v254 = vsel %vm252, %v248, 0
    %v257 = vsel %vm252, %v251, 0
    %259 = vmatprep.subr.bf16.mxu0 0
    %260 = vmatpush1.bf16.xpose.msra.mxu0 %v257
    %261 = vmatprep.subr.bf16.mxu0 0
    %262 = vmatpush1.bf16.xpose.msra.mxu0 0
    %263 = vmatprep.subr.bf16.mxu0 0
    %264 = vmatpush1.bf16.xpose.msra.mxu0 0
    %265 = vmatprep.subr.bf16.mxu0 0
    %266 = vmatpush1.bf16.xpose.msra.mxu0 0
    %267 = vmatprep.subr.bf16.mxu0 0
    %268 = vmatpush1.bf16.xpose.msra.mxu0 0
    %269 = vmatprep.subr.bf16.mxu0 0
    %270 = vmatpush1.bf16.xpose.msra.mxu0 0
    %271 = vmatprep.subr.bf16.mxu0 0
    %272 = vmatpush1.bf16.xpose.msra.mxu0 0
    %273 = vmatprep.subr.bf16.mxu0 0
    %274 = vmatpush1.bf16.xpose.msra.mxu0 0
    %275 = vmatprep.subr.bf16.mxu0 0
    %276 = vmatpush1.bf16.xpose.msra.mxu0 0
    %277 = vmatprep.subr.bf16.mxu0 0
    %278 = vmatpush1.bf16.xpose.msra.mxu0 0
    %279 = vmatprep.subr.bf16.mxu0 0
    %280 = vmatpush1.bf16.xpose.msra.mxu0 0
    %281 = vmatprep.subr.bf16.mxu0 0
    %282 = vmatpush1.bf16.xpose.msra.mxu0 0
    %283 = vmatprep.subr.bf16.mxu0 0
    %284 = vmatpush1.bf16.xpose.msra.mxu0 0
    %285 = vmatprep.subr.bf16.mxu0 0
    %286 = vmatpush1.bf16.xpose.msra.mxu0 0
    %287 = vmatprep.subr.bf16.mxu0 0
    %288 = vmatpush1.bf16.xpose.msra.mxu0 0
    %289 = vmatprep.subr.bf16.mxu0 0
    %290 = vmatpush1.bf16.xpose.msra.mxu0 0
    %291 = vmatprep.mubr.bf16.mxu0 0
    %292 = vmatmul.mubr.bf16.gmra.mrb[0].mxu0 %v254
    %v293 = vpop.f32.mrb[0].mxu0
    %v294 = vadd.f32 %v246, %v293
    %v295 = vpop.f32.mrb[0].mxu0
    %v296 = vpop.f32.mrb[0].mxu0
    %v297 = vadd.f32 %v247, %v296
    %v298 = vpop.f32.mrb[0].mxu0
    %299 = vdwg.mxu0
    %vm300 = vcmask 130048
    %v301 = vsel %vm300, %v294, -inf
    %302 = vmax.xlane.f32.xlu0 %v301
    %v303 = vpop.xlane.xlu0 %302
    %v304 = vsel %vm300, %v297, -inf
    %305 = vmax.xlane.f32.xlu0 %v304
    %v306 = vpop.xlane.xlu0 %305
    %v307 = vsub.f32 %v294, %v303
    %v308 = vsub.f32 %v297, %v306
    %v309 = vmul.f32 %v307, 1.442695
    %v310 = vpow.pop %v309
    %v311 = vmul.f32 %v308, 1.442695
    %v312 = vpow.pop %v311
    %v313 = vsel %vm300, %v310, 0.0
    %314 = vadd.xlane.f32.xlu0 %v313
    %v315 = vpop.xlane.xlu0 %314
    %v316 = vsel %vm300, %v312, 0.0
    %317 = vadd.xlane.f32.xlu0 %v316
    %v318 = vpop.xlane.xlu0 %317
    %v319 = vrcp.pop %v315
    %v320 = vrcp.pop %v318
    %v321 = vmul.f32 %v310, %v319
    %v322 = vmul.f32 %v312, %v320
    %v323 = vpack.c.bf16 %v322, %v321
    %324 = vrot.lane.b32.xlu0 %v248, 64
    %v325 = vpop.permute.xlu0 %324
    %v328 = vsel %vm300, %v323, 0
    %330 = vmatprep.subr.bf16.mxu0 0
    %331 = vmatpush1.bf16.msra.mxu0 %v325
    %332 = vmatprep.subr.bf16.mxu0 0
    %333 = vmatpush1.bf16.msra.mxu0 0
    %334 = vmatprep.subr.bf16.mxu0 0
    %335 = vmatpush1.bf16.msra.mxu0 0
    %336 = vmatprep.subr.bf16.mxu0 0
    %337 = vmatpush1.bf16.msra.mxu0 0
    %338 = vmatprep.subr.bf16.mxu0 0
    %339 = vmatpush1.bf16.msra.mxu0 0
    %340 = vmatprep.subr.bf16.mxu0 0
    %341 = vmatpush1.bf16.msra.mxu0 0
    %342 = vmatprep.subr.bf16.mxu0 0
    %343 = vmatpush1.bf16.msra.mxu0 0
    %344 = vmatprep.subr.bf16.mxu0 0
    %345 = vmatpush1.bf16.msra.mxu0 0
    %346 = vmatprep.subr.bf16.mxu0 0
    %347 = vmatpush1.bf16.msra.mxu0 0
    %348 = vmatprep.subr.bf16.mxu0 0
    %349 = vmatpush1.bf16.msra.mxu0 0
    %350 = vmatprep.subr.bf16.mxu0 0
    %351 = vmatpush1.bf16.msra.mxu0 0
    %352 = vmatprep.subr.bf16.mxu0 0
    %353 = vmatpush1.bf16.msra.mxu0 0
    %354 = vmatprep.subr.bf16.mxu0 0
    %355 = vmatpush1.bf16.msra.mxu0 0
    %356 = vmatprep.subr.bf16.mxu0 0
    %357 = vmatpush1.bf16.msra.mxu0 0
    %358 = vmatprep.subr.bf16.mxu0 0
    %359 = vmatpush1.bf16.msra.mxu0 0
    %360 = vmatprep.subr.bf16.mxu0 0
    %361 = vmatpush1.bf16.msra.mxu0 0
    %362 = vmatprep.mubr.bf16.mxu0 0
    %363 = vmatmul.mubr.bf16.gmra.mrb[0].mxu0 %v328
    %v364 = vpop.f32.mrb[0].mxu0
    %v365 = vadd.f32 0.0, %v364
    %v366 = vpop.f32.mrb[0].mxu0
    %v367 = vpop.f32.mrb[0].mxu0
    %v368 = vadd.f32 0.0, %v367
    %v369 = vpop.f32.mrb[0].mxu0
    %370 = vdwg.mxu0
    %371 = vst.msk [vmem:[#allocation2] sm:$0xff] %vm252, %v365
    %372 = vst.msk [vmem:[#allocation2 + $0x8] sm:$0xff] %vm252, %v368
    %373 = vrot.lane.b32.xlu0 %v248, 120
    %v374 = vpop.permute.xlu0 %373
    %375 = vrot.lane.b32.xlu0 %v248, 88
    %v376 = vpop.permute.xlu0 %375
    %v378 = vsel %vm252, %v374, 0
    %v381 = vsel %vm252, %v376, 0
    %383 = vmatprep.subr.bf16.mxu0 0
    %384 = vmatpush1.bf16.xpose.msra.mxu0 %v381
    %385 = vmatprep.subr.bf16.mxu0 0
    %386 = vmatpush1.bf16.xpose.msra.mxu0 0
    %387 = vmatprep.subr.bf16.mxu0 0
    %388 = vmatpush1.bf16.xpose.msra.mxu0 0
    %389 = vmatprep.subr.bf16.mxu0 0
    %390 = vmatpush1.bf16.xpose.msra.mxu0 0
    %391 = vmatprep.subr.bf16.mxu0 0
    %392 = vmatpush1.bf16.xpose.msra.mxu0 0
    %393 = vmatprep.subr.bf16.mxu0 0
    %394 = vmatpush1.bf16.xpose.msra.mxu0 0
    %395 = vmatprep.subr.bf16.mxu0 0
    %396 = vmatpush1.bf16.xpose.msra.mxu0 0
    %397 = vmatprep.subr.bf16.mxu0 0
    %398 = vmatpush1.bf16.xpose.msra.mxu0 0
    %399 = vmatprep.subr.bf16.mxu0 0
    %400 = vmatpush1.bf16.xpose.msra.mxu0 0
    %401 = vmatprep.subr.bf16.mxu0 0
    %402 = vmatpush1.bf16.xpose.msra.mxu0 0
    %403 = vmatprep.subr.bf16.mxu0 0
    %404 = vmatpush1.bf16.xpose.msra.mxu0 0
    %405 = vmatprep.subr.bf16.mxu0 0
    %406 = vmatpush1.bf16.xpose.msra.mxu0 0
    %407 = vmatprep.subr.bf16.mxu0 0
    %408 = vmatpush1.bf16.xpose.msra.mxu0 0
    %409 = vmatprep.subr.bf16.mxu0 0
    %410 = vmatpush1.bf16.xpose.msra.mxu0 0
    %411 = vmatprep.subr.bf16.mxu0 0
    %412 = vmatpush1.bf16.xpose.msra.mxu0 0
    %413 = vmatprep.subr.bf16.mxu0 0
    %414 = vmatpush1.bf16.xpose.msra.mxu0 0
    %415 = vmatprep.mubr.bf16.mxu0 0
    %416 = vmatmul.mubr.bf16.gmra.mrb[0].mxu0 %v378
    %v417 = vpop.f32.mrb[0].mxu0
    %v418 = vadd.f32 %v246, %v417
    %v419 = vpop.f32.mrb[0].mxu0
    %v420 = vpop.f32.mrb[0].mxu0
    %v421 = vadd.f32 %v247, %v420
    %v422 = vpop.f32.mrb[0].mxu0
    %423 = vdwg.mxu0
    %v424 = vsel %vm300, %v418, -inf
    %425 = vmax.xlane.f32.xlu0 %v424
    %v426 = vpop.xlane.xlu0 %425
    %v427 = vsel %vm300, %v421, -inf
    %428 = vmax.xlane.f32.xlu0 %v427
    %v429 = vpop.xlane.xlu0 %428
    %v430 = vsub.f32 %v418, %v426
    %v431 = vsub.f32 %v421, %v429
    %v432 = vmul.f32 %v430, 1.442695
    %v433 = vpow.pop %v432
    %v434 = vmul.f32 %v431, 1.442695
    %v435 = vpow.pop %v434
    %v436 = vsel %vm300, %v433, 0.0
    %437 = vadd.xlane.f32.xlu0 %v436
    %v438 = vpop.xlane.xlu0 %437
    %v439 = vsel %vm300, %v435, 0.0
    %440 = vadd.xlane.f32.xlu0 %v439
    %v441 = vpop.xlane.xlu0 %440
    %v442 = vrcp.pop %v438
    %v443 = vrcp.pop %v441
    %v444 = vmul.f32 %v433, %v442
    %v445 = vmul.f32 %v435, %v443
    %v446 = vpack.c.bf16 %v445, %v444
    %447 = vrot.lane.b32.xlu0 %v248, 56
    %v448 = vpop.permute.xlu0 %447
    %v451 = vsel %vm300, %v446, 0
    %453 = vmatprep.subr.bf16.mxu0 0
    %454 = vmatpush1.bf16.msra.mxu0 %v448
    %455 = vmatprep.subr.bf16.mxu0 0
    %456 = vmatpush1.bf16.msra.mxu0 0
    %457 = vmatprep.subr.bf16.mxu0 0
    %458 = vmatpush1.bf16.msra.mxu0 0
    %459 = vmatprep.subr.bf16.mxu0 0
    %460 = vmatpush1.bf16.msra.mxu0 0
    %461 = vmatprep.subr.bf16.mxu0 0
    %462 = vmatpush1.bf16.msra.mxu0 0
    %463 = vmatprep.subr.bf16.mxu0 0
    %464 = vmatpush1.bf16.msra.mxu0 0
    %465 = vmatprep.subr.bf16.mxu0 0
    %466 = vmatpush1.bf16.msra.mxu0 0
    %467 = vmatprep.subr.bf16.mxu0 0
    %468 = vmatpush1.bf16.msra.mxu0 0
    %469 = vmatprep.subr.bf16.mxu0 0
    %470 = vmatpush1.bf16.msra.mxu0 0
    %471 = vmatprep.subr.bf16.mxu0 0
    %472 = vmatpush1.bf16.msra.mxu0 0
    %473 = vmatprep.subr.bf16.mxu0 0
    %474 = vmatpush1.bf16.msra.mxu0 0
    %475 = vmatprep.subr.bf16.mxu0 0
    %476 = vmatpush1.bf16.msra.mxu0 0
    %477 = vmatprep.subr.bf16.mxu0 0
    %478 = vmatpush1.bf16.msra.mxu0 0
    %479 = vmatprep.subr.bf16.mxu0 0
    %480 = vmatpush1.bf16.msra.mxu0 0
    %481 = vmatprep.subr.bf16.mxu0 0
    %482 = vmatpush1.bf16.msra.mxu0 0
    %483 = vmatprep.subr.bf16.mxu0 0
    %484 = vmatpush1.bf16.msra.mxu0 0
    %485 = vmatprep.mubr.bf16.mxu0 0
    %486 = vmatmul.mubr.bf16.gmra.mrb[0].mxu0 %v451
    %v487 = vpop.f32.mrb[0].mxu0
    %v488 = vadd.f32 0.0, %v487
    %v489 = vpop.f32.mrb[0].mxu0
    %v490 = vpop.f32.mrb[0].mxu0
    %v491 = vadd.f32 0.0, %v490
    %v492 = vpop.f32.mrb[0].mxu0
    %493 = vdwg.mxu0
    %496 = vrot.lane.b32.xlu0 %v488, 8
    %v497 = vpop.permute.xlu0 %496
    %498 = vrot.lane.b32.xlu0 %v491, 8
    %v499 = vpop.permute.xlu0 %498
    %vm502 = vcmask 130112
    %503 = vst.msk [vmem:[#allocation2] sm:$0xff] %vm502, %v497
    %504 = vst.msk [vmem:[#allocation2 + $0x8] sm:$0xff] %vm502, %v499
    %505 = vrot.lane.b32.xlu0 %v248, 112
    %v506 = vpop.permute.xlu0 %505
    %507 = vrot.lane.b32.xlu0 %v248, 80
    %v508 = vpop.permute.xlu0 %507
    %v510 = vsel %vm252, %v506, 0
    %v513 = vsel %vm252, %v508, 0
    %515 = vmatprep.subr.bf16.mxu0 0
    %516 = vmatpush1.bf16.xpose.msra.mxu0 %v513
    %517 = vmatprep.subr.bf16.mxu0 0
    %518 = vmatpush1.bf16.xpose.msra.mxu0 0
    %519 = vmatprep.subr.bf16.mxu0 0
    %520 = vmatpush1.bf16.xpose.msra.mxu0 0
    %521 = vmatprep.subr.bf16.mxu0 0
    %522 = vmatpush1.bf16.xpose.msra.mxu0 0
    %523 = vmatprep.subr.bf16.mxu0 0
    %524 = vmatpush1.bf16.xpose.msra.mxu0 0
    %525 = vmatprep.subr.bf16.mxu0 0
    %526 = vmatpush1.bf16.xpose.msra.mxu0 0
    %527 = vmatprep.subr.bf16.mxu0 0
    %528 = vmatpush1.bf16.xpose.msra.mxu0 0
    %529 = vmatprep.subr.bf16.mxu0 0
    %530 = vmatpush1.bf16.xpose.msra.mxu0 0
    %531 = vmatprep.subr.bf16.mxu0 0
    %532 = vmatpush1.bf16.xpose.msra.mxu0 0
    %533 = vmatprep.subr.bf16.mxu0 0
    %534 = vmatpush1.bf16.xpose.msra.mxu0 0
    %535 = vmatprep.subr.bf16.mxu0 0
    %536 = vmatpush1.bf16.xpose.msra.mxu0 0
    %537 = vmatprep.subr.bf16.mxu0 0
    %538 = vmatpush1.bf16.xpose.msra.mxu0 0
    %539 = vmatprep.subr.bf16.mxu0 0
    %540 = vmatpush1.bf16.xpose.msra.mxu0 0
    %541 = vmatprep.subr.bf16.mxu0 0
    %542 = vmatpush1.bf16.xpose.msra.mxu0 0
    %543 = vmatprep.subr.bf16.mxu0 0
    %544 = vmatpush1.bf16.xpose.msra.mxu0 0
    %545 = vmatprep.subr.bf16.mxu0 0
    %546 = vmatpush1.bf16.xpose.msra.mxu0 0
    %547 = vmatprep.mubr.bf16.mxu0 0
    %548 = vmatmul.mubr.bf16.gmra.mrb[0].mxu0 %v510
    %v549 = vpop.f32.mrb[0].mxu0
    %v550 = vadd.f32 %v246, %v549
    %v551 = vpop.f32.mrb[0].mxu0
    %v552 = vpop.f32.mrb[0].mxu0
    %v553 = vadd.f32 %v247, %v552
    %v554 = vpop.f32.mrb[0].mxu0
    %555 = vdwg.mxu0
    %v556 = vsel %vm300, %v550, -inf
    %557 = vmax.xlane.f32.xlu0 %v556
    %v558 = vpop.xlane.xlu0 %557
    %v559 = vsel %vm300, %v553, -inf
    %560 = vmax.xlane.f32.xlu0 %v559
    %v561 = vpop.xlane.xlu0 %560
    %v562 = vsub.f32 %v550, %v558
    %v563 = vsub.f32 %v553, %v561
    %v564 = vmul.f32 %v562, 1.442695
    %v565 = vpow.pop %v564
    %v566 = vmul.f32 %v563, 1.442695
    %v567 = vpow.pop %v566
    %v568 = vsel %vm300, %v565, 0.0
    %569 = vadd.xlane.f32.xlu0 %v568
    %v570 = vpop.xlane.xlu0 %569
    %v571 = vsel %vm300, %v567, 0.0
    %572 = vadd.xlane.f32.xlu0 %v571
    %v573 = vpop.xlane.xlu0 %572
    %v574 = vrcp.pop %v570
    %v575 = vrcp.pop %v573
    %v576 = vmul.f32 %v565, %v574
    %v577 = vmul.f32 %v567, %v575
    %v578 = vpack.c.bf16 %v577, %v576
    %579 = vrot.lane.b32.xlu0 %v248, 48
    %v580 = vpop.permute.xlu0 %579
    %v583 = vsel %vm300, %v578, 0
    %585 = vmatprep.subr.bf16.mxu0 0
    %586 = vmatpush1.bf16.msra.mxu0 %v580
    %587 = vmatprep.subr.bf16.mxu0 0
    %588 = vmatpush1.bf16.msra.mxu0 0
    %589 = vmatprep.subr.bf16.mxu0 0
    %590 = vmatpush1.bf16.msra.mxu0 0
    %591 = vmatprep.subr.bf16.mxu0 0
    %592 = vmatpush1.bf16.msra.mxu0 0
    %593 = vmatprep.subr.bf16.mxu0 0
    %594 = vmatpush1.bf16.msra.mxu0 0
    %595 = vmatprep.subr.bf16.mxu0 0
    %596 = vmatpush1.bf16.msra.mxu0 0
    %597 = vmatprep.subr.bf16.mxu0 0
    %598 = vmatpush1.bf16.msra.mxu0 0
    %599 = vmatprep.subr.bf16.mxu0 0
    %600 = vmatpush1.bf16.msra.mxu0 0
    %601 = vmatprep.subr.bf16.mxu0 0
    %602 = vmatpush1.bf16.msra.mxu0 0
    %603 = vmatprep.subr.bf16.mxu0 0
    %604 = vmatpush1.bf16.msra.mxu0 0
    %605 = vmatprep.subr.bf16.mxu0 0
    %606 = vmatpush1.bf16.msra.mxu0 0
    %607 = vmatprep.subr.bf16.mxu0 0
    %608 = vmatpush1.bf16.msra.mxu0 0
    %609 = vmatprep.subr.bf16.mxu0 0
    %610 = vmatpush1.bf16.msra.mxu0 0
    %611 = vmatprep.subr.bf16.mxu0 0
    %612 = vmatpush1.bf16.msra.mxu0 0
    %613 = vmatprep.subr.bf16.mxu0 0
    %614 = vmatpush1.bf16.msra.mxu0 0
    %615 = vmatprep.subr.bf16.mxu0 0
    %616 = vmatpush1.bf16.msra.mxu0 0
    %617 = vmatprep.mubr.bf16.mxu0 0
    %618 = vmatmul.mubr.bf16.gmra.mrb[0].mxu0 %v583
    %v619 = vpop.f32.mrb[0].mxu0
    %v620 = vadd.f32 0.0, %v619
    %v621 = vpop.f32.mrb[0].mxu0
    %v622 = vpop.f32.mrb[0].mxu0
    %v623 = vadd.f32 0.0, %v622
    %v624 = vpop.f32.mrb[0].mxu0
    %625 = vdwg.mxu0
    %628 = vrot.lane.b32.xlu0 %v620, 16
    %v629 = vpop.permute.xlu0 %628
    %630 = vrot.lane.b32.xlu0 %v623, 16
    %v631 = vpop.permute.xlu0 %630
    %vm634 = vcmask 195712
    %635 = vst.msk [vmem:[#allocation2] sm:$0xff] %vm634, %v629
    %636 = vst.msk [vmem:[#allocation2 + $0x8] sm:$0xff] %vm634, %v631
    %637 = vrot.lane.b32.xlu0 %v248, 104
    %v638 = vpop.permute.xlu0 %637
    %639 = vrot.lane.b32.xlu0 %v248, 72
    %v640 = vpop.permute.xlu0 %639
    %v642 = vsel %vm252, %v638, 0
    %v645 = vsel %vm252, %v640, 0
    %647 = vmatprep.subr.bf16.mxu0 0
    %648 = vmatpush1.bf16.xpose.msra.mxu0 %v645
    %649 = vmatprep.subr.bf16.mxu0 0
    %650 = vmatpush1.bf16.xpose.msra.mxu0 0
    %651 = vmatprep.subr.bf16.mxu0 0
    %652 = vmatpush1.bf16.xpose.msra.mxu0 0
    %653 = vmatprep.subr.bf16.mxu0 0
    %654 = vmatpush1.bf16.xpose.msra.mxu0 0
    %655 = vmatprep.subr.bf16.mxu0 0
    %656 = vmatpush1.bf16.xpose.msra.mxu0 0
    %657 = vmatprep.subr.bf16.mxu0 0
    %658 = vmatpush1.bf16.xpose.msra.mxu0 0
    %659 = vmatprep.subr.bf16.mxu0 0
    %660 = vmatpush1.bf16.xpose.msra.mxu0 0
    %661 = vmatprep.subr.bf16.mxu0 0
    %662 = vmatpush1.bf16.xpose.msra.mxu0 0
    %663 = vmatprep.subr.bf16.mxu0 0
    %664 = vmatpush1.bf16.xpose.msra.mxu0 0
    %665 = vmatprep.subr.bf16.mxu0 0
    %666 = vmatpush1.bf16.xpose.msra.mxu0 0
    %667 = vmatprep.subr.bf16.mxu0 0
    %668 = vmatpush1.bf16.xpose.msra.mxu0 0
    %669 = vmatprep.subr.bf16.mxu0 0
    %670 = vmatpush1.bf16.xpose.msra.mxu0 0
    %671 = vmatprep.subr.bf16.mxu0 0
    %672 = vmatpush1.bf16.xpose.msra.mxu0 0
    %673 = vmatprep.subr.bf16.mxu0 0
    %674 = vmatpush1.bf16.xpose.msra.mxu0 0
    %675 = vmatprep.subr.bf16.mxu0 0
    %676 = vmatpush1.bf16.xpose.msra.mxu0 0
    %677 = vmatprep.subr.bf16.mxu0 0
    %678 = vmatpush1.bf16.xpose.msra.mxu0 0
    %679 = vmatprep.mubr.bf16.mxu0 0
    %680 = vmatmul.mubr.bf16.gmra.mrb[0].mxu0 %v642
    %v681 = vpop.f32.mrb[0].mxu0
    %v682 = vadd.f32 %v246, %v681
    %v683 = vpop.f32.mrb[0].mxu0
    %v684 = vpop.f32.mrb[0].mxu0
    %v685 = vadd.f32 %v247, %v684
    %v686 = vpop.f32.mrb[0].mxu0
    %687 = vdwg.mxu0
    %v688 = vsel %vm300, %v682, -inf
    %689 = vmax.xlane.f32.xlu0 %v688
    %v690 = vpop.xlane.xlu0 %689
    %v691 = vsel %vm300, %v685, -inf
    %692 = vmax.xlane.f32.xlu0 %v691
    %v693 = vpop.xlane.xlu0 %692
    %v694 = vsub.f32 %v682, %v690
    %v695 = vsub.f32 %v685, %v693
    %v696 = vmul.f32 %v694, 1.442695
    %v697 = vpow.pop %v696
    %v698 = vmul.f32 %v695, 1.442695
    %v699 = vpow.pop %v698
    %v700 = vsel %vm300, %v697, 0.0
    %701 = vadd.xlane.f32.xlu0 %v700
    %v702 = vpop.xlane.xlu0 %701
    %v703 = vsel %vm300, %v699, 0.0
    %704 = vadd.xlane.f32.xlu0 %v703
    %v705 = vpop.xlane.xlu0 %704
    %v706 = vrcp.pop %v702
    %v707 = vrcp.pop %v705
    %v708 = vmul.f32 %v697, %v706
    %v709 = vmul.f32 %v699, %v707
    %v710 = vpack.c.bf16 %v709, %v708
    %711 = vrot.lane.b32.xlu0 %v248, 40
    %v712 = vpop.permute.xlu0 %711
    %v715 = vsel %vm300, %v710, 0
    %717 = vmatprep.subr.bf16.mxu0 0
    %718 = vmatpush1.bf16.msra.mxu0 %v712
    %719 = vmatprep.subr.bf16.mxu0 0
    %720 = vmatpush1.bf16.msra.mxu0 0
    %721 = vmatprep.subr.bf16.mxu0 0
    %722 = vmatpush1.bf16.msra.mxu0 0
    %723 = vmatprep.subr.bf16.mxu0 0
    %724 = vmatpush1.bf16.msra.mxu0 0
    %725 = vmatprep.subr.bf16.mxu0 0
    %726 = vmatpush1.bf16.msra.mxu0 0
    %727 = vmatprep.subr.bf16.mxu0 0
    %728 = vmatpush1.bf16.msra.mxu0 0
    %729 = vmatprep.subr.bf16.mxu0 0
    %730 = vmatpush1.bf16.msra.mxu0 0
    %731 = vmatprep.subr.bf16.mxu0 0
    %732 = vmatpush1.bf16.msra.mxu0 0
    %733 = vmatprep.subr.bf16.mxu0 0
    %734 = vmatpush1.bf16.msra.mxu0 0
    %735 = vmatprep.subr.bf16.mxu0 0
    %736 = vmatpush1.bf16.msra.mxu0 0
    %737 = vmatprep.subr.bf16.mxu0 0
    %738 = vmatpush1.bf16.msra.mxu0 0
    %739 = vmatprep.subr.bf16.mxu0 0
    %740 = vmatpush1.bf16.msra.mxu0 0
    %741 = vmatprep.subr.bf16.mxu0 0
    %742 = vmatpush1.bf16.msra.mxu0 0
    %743 = vmatprep.subr.bf16.mxu0 0
    %744 = vmatpush1.bf16.msra.mxu0 0
    %745 = vmatprep.subr.bf16.mxu0 0
    %746 = vmatpush1.bf16.msra.mxu0 0
    %747 = vmatprep.subr.bf16.mxu0 0
    %748 = vmatpush1.bf16.msra.mxu0 0
    %749 = vmatprep.mubr.bf16.mxu0 0
    %750 = vmatmul.mubr.bf16.gmra.mrb[0].mxu0 %v715
    %v751 = vpop.f32.mrb[0].mxu0
    %v752 = vadd.f32 0.0, %v751
    %v753 = vpop.f32.mrb[0].mxu0
    %v754 = vpop.f32.mrb[0].mxu0
    %v755 = vadd.f32 0.0, %v754
    %v756 = vpop.f32.mrb[0].mxu0
    %757 = vdwg.mxu0
    %760 = vrot.lane.b32.xlu0 %v752, 24
    %v761 = vpop.permute.xlu0 %760
    %762 = vrot.lane.b32.xlu0 %v755, 24
    %v763 = vpop.permute.xlu0 %762
    %vm766 = vcmask 261312
    %767 = vst.msk [vmem:[#allocation2] sm:$0xff] %vm766, %v761
    %768 = vst.msk [vmem:[#allocation2 + $0x8] sm:$0xff] %vm766, %v763
    %v769 = vld [vmem:[#allocation2] sm:$0xff]
    %v770 = vld [vmem:[#allocation2 + $0x8] sm:$0xff]
    %v771 = vpack.c.bf16 %v770, %v769
    %v772 = vld [vmem:[%s6] sm:$0xf]
    %v773 = vld [vmem:[%s6 + $0x4] sm:$0xf]
    %v774 = vld [vmem:[%s6 + $0x8] sm:$0xf]
    %v775 = vld [vmem:[%s6 + $0xc] sm:$0xf]
    %v776 = vld [vmem:[#allocation8] sm:$0x1]
    %v778 = vlaneseq
    %v779 = vshrl.u32 %v778, 7
    %v780 = vsub.s32 0, %v779
    %v781 = vrot.slane %v776, %v780
    %v787 = vunpack.c.l.b16 %v772
    %v788 = vunpack.c.l.b16 %v773
    %v789 = vunpack.c.l.b16 %v774
    %v790 = vunpack.c.l.b16 %v775
    %v791 = vpack.c.b16 %v788, %v787
    %v792 = vpack.c.b16 %v790, %v789
    %v796 = vsel %vm134, %v771, 0
    %798 = vmatprep.subr.bf16.mxu0 0
    %799 = vmatpush1.bf16.msra.mxu0 %v791
    %800 = vmatprep.subr.bf16.mxu0 0
    %801 = vmatpush1.bf16.msra.mxu0 %v792
    %802 = vmatprep.subr.bf16.mxu0 0
    %803 = vmatpush1.bf16.msra.mxu0 0
    %804 = vmatprep.subr.bf16.mxu0 0
    %805 = vmatpush1.bf16.msra.mxu0 0
    %806 = vmatprep.subr.bf16.mxu0 0
    %807 = vmatpush1.bf16.msra.mxu0 0
    %808 = vmatprep.subr.bf16.mxu0 0
    %809 = vmatpush1.bf16.msra.mxu0 0
    %810 = vmatprep.subr.bf16.mxu0 0
    %811 = vmatpush1.bf16.msra.mxu0 0
    %812 = vmatprep.subr.bf16.mxu0 0
    %813 = vmatpush1.bf16.msra.mxu0 0
    %814 = vmatprep.subr.bf16.mxu0 0
    %815 = vmatpush1.bf16.msra.mxu0 0
    %816 = vmatprep.subr.bf16.mxu0 0
    %817 = vmatpush1.bf16.msra.mxu0 0
    %818 = vmatprep.subr.bf16.mxu0 0
    %819 = vmatpush1.bf16.msra.mxu0 0
    %820 = vmatprep.subr.bf16.mxu0 0
    %821 = vmatpush1.bf16.msra.mxu0 0
    %822 = vmatprep.subr.bf16.mxu0 0
    %823 = vmatpush1.bf16.msra.mxu0 0
    %824 = vmatprep.subr.bf16.mxu0 0
    %825 = vmatpush1.bf16.msra.mxu0 0
    %826 = vmatprep.subr.bf16.mxu0 0
    %827 = vmatpush1.bf16.msra.mxu0 0
    %828 = vmatprep.subr.bf16.mxu0 0
    %829 = vmatpush1.bf16.msra.mxu0 0
    %830 = vmatprep.mubr.bf16.mxu0 0
    %831 = vmatmul.mubr.bf16.gmra.mrb[0].mxu0 %v796
    %v832 = vpop.f32.mrb[0].mxu0
    %v833 = vadd.f32 %v781, %v832
    %v834 = vpop.f32.mrb[0].mxu0
    %v835 = vpop.f32.mrb[0].mxu0
    %v836 = vadd.f32 %v781, %v835
    %v837 = vpop.f32.mrb[0].mxu0
    %838 = vdwg.mxu0
    %v839 = vadd.f32 %v130, %v833
    %v840 = vadd.f32 %v131, %v836
    %v841 = vld [vmem:[#allocation9] sm:$0x1]
    %v842 = vld [vmem:[#allocation11] sm:$0x1]
    %v843 = vsel %vm134, %v839, 0.0
    %844 = vadd.xlane.f32.xlu0 %v843
    %v845 = vpop.xlane.xlu0 %844
    %v846 = vsel %vm134, %v840, 0.0
    %847 = vadd.xlane.f32.xlu0 %v846
    %v848 = vpop.xlane.xlu0 %847
    %v849 = vmul.f32 %v845, %v141
    %v850 = vmul.f32 %v848, %v141
    %v851 = vsub.f32 %v839, %v849
    %v852 = vsub.f32 %v840, %v850
    %v853 = vmul.f32 %v851, %v851
    %v854 = vmul.f32 %v852, %v852
    %v855 = vsel %vm134, %v853, 0.0
    %856 = vadd.xlane.f32.xlu0 %v855
    %v857 = vpop.xlane.xlu0 %856
    %v858 = vsel %vm134, %v854, 0.0
    %859 = vadd.xlane.f32.xlu0 %v858
    %v860 = vpop.xlane.xlu0 %859
    %v861 = vmul.f32 %v857, %v141
    %v862 = vmul.f32 %v860, %v141
    %v863 = vadd.f32 %v861, 1e-05
    %v864 = vadd.f32 %v862, 1e-05
    %v865 = vrsqrt.pop %v863
    %v866 = vrsqrt.pop %v864
    %v867 = vmul.f32 %v851, %v865
    %v868 = vmul.f32 %v852, %v866
    %v870 = vlaneseq
    %v871 = vshrl.u32 %v870, 7
    %v872 = vsub.s32 0, %v871
    %v873 = vrot.slane %v841, %v872
    %v875 = vmul.f32 %v867, %v873
    %v876 = vmul.f32 %v868, %v873
    %v878 = vlaneseq
    %v879 = vshrl.u32 %v878, 7
    %v880 = vsub.s32 0, %v879
    %v881 = vrot.slane %v842, %v880
    %v883 = vadd.f32 %v875, %v881
    %v884 = vadd.f32 %v876, %v881
    %v885 = vpack.c.bf16 %v884, %v883
    %v886 = vld [vmem:[%s10] sm:$0xf]
    %v887 = vld [vmem:[%s10 + $0x4] sm:$0xf]
    %v888 = vld [vmem:[%s10 + $0x8] sm:$0xf]
    %v889 = vld [vmem:[%s10 + $0xc] sm:$0xf]
    %v890 = vld [vmem:[#allocation12] sm:$0x1]
    %v892 = vlaneseq
    %v893 = vshrl.u32 %v892, 7
    %v894 = vsub.s32 0, %v893
    %v895 = vrot.slane %v890, %v894
    %v901 = vunpack.c.l.b16 %v886
    %v902 = vunpack.c.l.b16 %v887
    %v903 = vunpack.c.l.b16 %v888
    %v904 = vunpack.c.l.b16 %v889
    %v905 = vpack.c.b16 %v902, %v901
    %v906 = vpack.c.b16 %v904, %v903
    %v910 = vsel %vm134, %v885, 0
    %912 = vmatprep.subr.bf16.mxu0 0
    %913 = vmatpush1.bf16.msra.mxu0 %v905
    %914 = vmatprep.subr.bf16.mxu0 0
    %915 = vmatpush1.bf16.msra.mxu0 %v906
    %916 = vmatprep.subr.bf16.mxu0 0
    %917 = vmatpush1.bf16.msra.mxu0 0
    %918 = vmatprep.subr.bf16.mxu0 0
    %919 = vmatpush1.bf16.msra.mxu0 0
    %920 = vmatprep.subr.bf16.mxu0 0
    %921 = vmatpush1.bf16.msra.mxu0 0
    %922 = vmatprep.subr.bf16.mxu0 0
    %923 = vmatpush1.bf16.msra.mxu0 0
    %924 = vmatprep.subr.bf16.mxu0 0
    %925 = vmatpush1.bf16.msra.mxu0 0
    %926 = vmatprep.subr.bf16.mxu0 0
    %927 = vmatpush1.bf16.msra.mxu0 0
    %928 = vmatprep.subr.bf16.mxu0 0
    %929 = vmatpush1.bf16.msra.mxu0 0
    %930 = vmatprep.subr.bf16.mxu0 0
    %931 = vmatpush1.bf16.msra.mxu0 0
    %932 = vmatprep.subr.bf16.mxu0 0
    %933 = vmatpush1.bf16.msra.mxu0 0
    %934 = vmatprep.subr.bf16.mxu0 0
    %935 = vmatpush1.bf16.msra.mxu0 0
    %936 = vmatprep.subr.bf16.mxu0 0
    %937 = vmatpush1.bf16.msra.mxu0 0
    %938 = vmatprep.subr.bf16.mxu0 0
    %939 = vmatpush1.bf16.msra.mxu0 0
    %940 = vmatprep.subr.bf16.mxu0 0
    %941 = vmatpush1.bf16.msra.mxu0 0
    %942 = vmatprep.subr.bf16.mxu0 0
    %943 = vmatpush1.bf16.msra.mxu0 0
    %944 = vmatprep.mubr.bf16.mxu0 0
    %945 = vmatmul.mubr.bf16.gmra.mrb[0].mxu0 %v910
    %v946 = vpop.f32.mrb[0].mxu0
    %v947 = vadd.f32 %v895, %v946
    %v948 = vpop.f32.mrb[0].mxu0
    %v949 = vpop.f32.mrb[0].mxu0
    %v950 = vadd.f32 %v895, %v949
    %v951 = vpop.f32.mrb[0].mxu0
    %952 = vdwg.mxu0
    %v953 = vmul.f32 %v947, 0.5
    %v954 = vmul.f32 %v950, 0.5
    %v955 = vmul.f32 %v947, 0.70710677
    %v956 = vmul.f32 %v950, 0.70710677
    %vm957 = vcmp.ge.f32.partialorder %v955, 0.0
    %vm958 = vcmp.ge.f32.partialorder %v956, 0.0
    %v959 = vsel %vm957, 1.0, -1.0
    %v960 = vsel %vm958, 1.0, -1.0
    %v961 = vand.u32 2147483647, %v955
    %v962 = vand.u32 2147483647, %v956
    %v963 = vmul.f32 %v961, 0.3275911
    %v964 = vmul.f32 %v962, 0.3275911
    %v965 = vadd.f32 %v963, 1.0
    %v966 = vadd.f32 %v964, 1.0
    %v967 = vrcp.pop %v965
    %v968 = vrcp.pop %v966
    %v969 = vmul.f32 %v967, 1.0614054
    %v970 = vmul.f32 %v968, 1.0614054
    %v971 = vadd.f32 %v969, -1.4531521
    %v972 = vadd.f32 %v970, -1.4531521
    %v973 = vmul.f32 %v971, %v967
    %v974 = vmul.f32 %v972, %v968
    %v975 = vadd.f32 %v973, 1.4214138
    %v976 = vadd.f32 %v974, 1.4214138
    %v977 = vmul.f32 %v975, %v967
    %v978 = vmul.f32 %v976, %v968
    %v979 = vadd.f32 %v977, -0.28449672
    %v980 = vadd.f32 %v978, -0.28449672
    %v981 = vmul.f32 %v979, %v967
    %v982 = vmul.f32 %v980, %v968
    %v983 = vadd.f32 %v981, 0.2548296
    %v984 = vadd.f32 %v982, 0.2548296
    %v985 = vmul.f32 %v983, %v967
    %v986 = vmul.f32 %v984, %v968
    %v987 = vsub.f32 0.0, %v961
    %v988 = vsub.f32 0.0, %v962
    %v989 = vmul.f32 %v987, %v961
    %v990 = vmul.f32 %v988, %v962
    %v991 = vmul.f32 %v989, 1.442695
    %v992 = vpow.pop %v991
    %v993 = vmul.f32 %v990, 1.442695
    %v994 = vpow.pop %v993
    %v995 = vmul.f32 %v985, %v992
    %v996 = vmul.f32 %v986, %v994
    %v997 = vsub.f32 1.0, %v995
    %v998 = vsub.f32 1.0, %v996
    %v999 = vmul.f32 %v959, %v997
    %v1000 = vmul.f32 %v960, %v998
    %v1001 = vadd.f32 %v999, 1.0
    %v1002 = vadd.f32 %v1000, 1.0
    %v1003 = vmul.f32 %v953, %v1001
    %v1004 = vmul.f32 %v954, %v1002
    %v1005 = vpack.c.bf16 %v1004, %v1003
    %v1006 = vld [vmem:[%s12] sm:$0xf]
    %v1007 = vld [vmem:[%s12 + $0x4] sm:$0xf]
    %v1008 = vld [vmem:[%s12 + $0x8] sm:$0xf]
    %v1009 = vld [vmem:[%s12 + $0xc] sm:$0xf]
    %v1010 = vld [vmem:[%s12 + $0x10] sm:$0xf]
    %v1011 = vld [vmem:[%s12 + $0x14] sm:$0xf]
    %v1012 = vld [vmem:[%s12 + $0x18] sm:$0xf]
    %v1013 = vld [vmem:[%s12 + $0x1c] sm:$0xf]
    %v1014 = vld [vmem:[#allocation14] sm:$0x1]
    %v1016 = vlaneseq
    %v1017 = vshrl.u32 %v1016, 7
    %v1018 = vsub.s32 0, %v1017
    %v1019 = vrot.slane %v1014, %v1018
    %v1029 = vunpack.c.l.b16 %v1006
    %v1030 = vunpack.c.l.b16 %v1007
    %v1031 = vunpack.c.l.b16 %v1008
    %v1032 = vunpack.c.l.b16 %v1009
    %v1033 = vunpack.c.l.b16 %v1010
    %v1034 = vunpack.c.l.b16 %v1011
    %v1035 = vunpack.c.l.b16 %v1012
    %v1036 = vunpack.c.l.b16 %v1013
    %v1037 = vpack.c.b16 %v1030, %v1029
    %v1038 = vpack.c.b16 %v1032, %v1031
    %v1039 = vpack.c.b16 %v1034, %v1033
    %v1040 = vpack.c.b16 %v1036, %v1035
    %vm1045 = vcmask 523264
    %v1047 = vsel %vm1045, %v1005, 0
    %1049 = vmatprep.subr.bf16.mxu0 0
    %1050 = vmatpush1.bf16.msra.mxu0 %v1037
    %1051 = vmatprep.subr.bf16.mxu0 0
    %1052 = vmatpush1.bf16.msra.mxu0 %v1038
    %1053 = vmatprep.subr.bf16.mxu0 0
    %1054 = vmatpush1.bf16.msra.mxu0 %v1039
    %1055 = vmatprep.subr.bf16.mxu0 0
    %1056 = vmatpush1.bf16.msra.mxu0 %v1040
    %1057 = vmatprep.subr.bf16.mxu0 0
    %1058 = vmatpush1.bf16.msra.mxu0 0
    %1059 = vmatprep.subr.bf16.mxu0 0
    %1060 = vmatpush1.bf16.msra.mxu0 0
    %1061 = vmatprep.subr.bf16.mxu0 0
    %1062 = vmatpush1.bf16.msra.mxu0 0
    %1063 = vmatprep.subr.bf16.mxu0 0
    %1064 = vmatpush1.bf16.msra.mxu0 0
    %1065 = vmatprep.subr.bf16.mxu0 0
    %1066 = vmatpush1.bf16.msra.mxu0 0
    %1067 = vmatprep.subr.bf16.mxu0 0
    %1068 = vmatpush1.bf16.msra.mxu0 0
    %1069 = vmatprep.subr.bf16.mxu0 0
    %1070 = vmatpush1.bf16.msra.mxu0 0
    %1071 = vmatprep.subr.bf16.mxu0 0
    %1072 = vmatpush1.bf16.msra.mxu0 0
    %1073 = vmatprep.subr.bf16.mxu0 0
    %1074 = vmatpush1.bf16.msra.mxu0 0
    %1075 = vmatprep.subr.bf16.mxu0 0
    %1076 = vmatpush1.bf16.msra.mxu0 0
    %1077 = vmatprep.subr.bf16.mxu0 0
    %1078 = vmatpush1.bf16.msra.mxu0 0
    %1079 = vmatprep.subr.bf16.mxu0 0
    %1080 = vmatpush1.bf16.msra.mxu0 0
    %1081 = vmatprep.mubr.bf16.mxu0 0
    %1082 = vmatmul.mubr.bf16.gmra.mrb[0].mxu0 %v1047
    %v1083 = vpop.f32.mrb[0].mxu0
    %v1084 = vadd.f32 %v1019, %v1083
    %v1085 = vpop.f32.mrb[0].mxu0
    %v1086 = vpop.f32.mrb[0].mxu0
    %v1087 = vadd.f32 %v1019, %v1086
    %v1088 = vpop.f32.mrb[0].mxu0
    %1089 = vdwg.mxu0
    %v1090 = vadd.f32 %v839, %v1084
    %v1091 = vadd.f32 %v840, %v1087
    %1092 = vst.msk [vmem:[#allocation15] sm:$0xff] %vm134, %v1090
    %1093 = vst.msk [vmem:[#allocation15 + $0x8] sm:$0xff] %vm134, %v1091
    // Predicated region
    $region86: #{transformer_encoder_layer.1} parent=1 // pred_check
      _
    $region87: #{transformer_encoder_layer.1} parent=1 // pred_check_branch
      %1095 = sbr.rel (0) target = $region89
    $region88: #{transformer_encoder_layer.1} parent=1 // pred_region
      %s1097 = ssub.s32 256, 256
      %1098 = vsyncadd [#allocation5], %s1097
      %s1099 = sshll.u32 [#allocation15], 4
      %s1100 = int_to_ptr.vmem [resolvable:$true] %s1099
      %1105 = dma.vmem_to_hbm [thread:$0]  %s1100, 256, %s14, [#allocation5], 128, 128, 8
    $region89: #{transformer_encoder_layer.1} parent=1 // pred_fallthru
      _
    // Predicated region
    $region90: #{transformer_encoder_layer.1} parent=1 // pred_check
      _
    $region91: #{transformer_encoder_layer.1} parent=1 // pred_check_branch
      %1107 = sbr.rel (0) target = $region93
    $region92: #{transformer_encoder_layer.1} parent=1 // pred_region
      %1108 = dma.done [#allocation5], 256
    $region93: #{transformer_encoder_layer.1} parent=1 // pred_fallthru
      _
    %1109 = vsyncpa [#allocation4], 1
    %1110 = vsyncpa [#allocation7], 1
    %1111 = vsyncpa [#allocation10], 1
    %1112 = vsyncpa [#allocation13], 1
    %1113 = vsyncpa [#allocation5], 1

</llo_original>
